<compile_context>
chip_gen: v7x
topology: tpu7x:2x2x1
jax: 0.10.0
libtpu: 0.0.40
codegen_flags: <defaults>
</compile_context>

<pallas_src>
import functools
import math

import jax
import jax.numpy as jnp
import numpy as np
from jax.experimental import pallas as pl
from jax.experimental.pallas import tpu as pltpu


# ----------------------------- Pallas kernel --------------------------------

def _layer_norm(x, w, b, eps=1e-5):
    mu = jnp.mean(x, axis=-1, keepdims=True)
    var = jnp.mean((x - mu) ** 2, axis=-1, keepdims=True)
    return (x - mu) * jax.lax.rsqrt(var + eps) * w + b


def _transformer_kernel(n_head, has_mask, *refs):
    """One grid step = one ResidualAttentionBlock applied to one batch tile.

    Grid: (batch_tiles, layers); layers is the inner ("arbitrary") axis.
    refs = x, [mask], 12 per-layer weight slices, out.
    The residual stream is carried in `out_ref` (its block index ignores the
    layer axis, so it stays resident in VMEM across the whole layer stack).
    """
    out_ref = refs[-1]
    x_ref = refs[0]
    if has_mask:
        mask_ref = refs[1]
        wrefs = refs[2:-1]
    else:
        mask_ref = None
        wrefs = refs[1:-1]
    (ln1w_ref, ln1b_ref, wqkv_ref, bqkv_ref, wo_ref, bo_ref,
     ln2w_ref, ln2b_ref, wfc_ref, bfc_ref, wproj_ref, bproj_ref) = wrefs

    layer = pl.program_id(1)
    bn, Lp, D = x_ref.shape
    H = n_head
    Hd = D // H
    bf16 = jnp.bfloat16

    # ----- initialize the resident residual stream on the first layer -----
    @pl.when(layer == 0)
    def _():
        out_ref[...] = x_ref[...]

    x2 = out_ref[...].reshape(bn * Lp, D)                  # (bn*Lp, D) f32

    # ---------------- attention branch (pre-LN) ----------------
    # 1/sqrt(Hd) is pre-folded into the q columns of wqkv/bqkv in the wrapper.
    xl = _layer_norm(x2, ln1w_ref[0], ln1b_ref[0])         # f32 statistics
    qkv = jnp.dot(xl.astype(bf16), wqkv_ref[0],
                  preferred_element_type=jnp.float32) + bqkv_ref[0]  # (bn*Lp, 3D)
    qkv3 = qkv.reshape(bn, Lp, 3 * D).astype(bf16)

    # Head gather into a single leading batch dim (H*bn, Lp, Hd), head-major,
    # done in bf16 to halve the copy traffic.
    # TODO(synk): switch to a single 4-D einsum ('blhd,bmhd->bhlm') once Mosaic
    #             dot_general supports multiple / non-leading batch dims; the
    #             slice+concat gather below is the layout-safe lowering path.
    q = jnp.concatenate(
        [qkv3[:, :, h * Hd:(h + 1) * Hd] for h in range(H)], axis=0)
    k = jnp.concatenate(
        [qkv3[:, :, D + h * Hd:D + (h + 1) * Hd] for h in range(H)], axis=0)
    v = jnp.concatenate(
        [qkv3[:, :, 2 * D + h * Hd:2 * D + (h + 1) * Hd] for h in range(H)],
        axis=0)

    # Batched scores / softmax / weighted values.
    s = jnp.einsum('bld,bmd->blm', q, k,
                   preferred_element_type=jnp.float32)     # (H*bn, Lp, Lp) f32
    if has_mask:
        s = s + mask_ref[...]
    s = s - jnp.max(s, axis=-1, keepdims=True)
    p = jnp.exp(s)
    p = p * pl.reciprocal(jnp.sum(p, axis=-1, keepdims=True), approx=True)
    o = jnp.einsum('blm,bmd->bld', p.astype(bf16), v,
                   preferred_element_type=jnp.float32).astype(bf16)

    # Merge heads back along lanes and do ONE full-D output projection.
    o2 = jnp.concatenate([o[h * bn:(h + 1) * bn] for h in range(H)], axis=-1)
    o2 = o2.reshape(bn * Lp, D)
    attn_out = jnp.dot(o2, wo_ref[0],
                       preferred_element_type=jnp.float32) + bo_ref[0]
    x2 = x2 + attn_out

    # ---------------- MLP branch (pre-LN, QuickGELU) ----------------
    # TODO(synk): on v7x with large D / block_n, chunk the 4D hidden dim to cap
    #             the f32 hfc live range under the 64 MiB per-core VMEM.
    xl2 = _layer_norm(x2, ln2w_ref[0], ln2b_ref[0])
    hfc = jnp.dot(xl2.astype(bf16), wfc_ref[0],
                  preferred_element_type=jnp.float32) + bfc_ref[0]   # (bn*Lp, 4D)
    hfc = hfc * jax.nn.sigmoid(1.702 * hfc)                # QuickGELU in f32
    mlp_out = jnp.dot(hfc.astype(bf16), wproj_ref[0],
                      preferred_element_type=jnp.float32) + bproj_ref[0]
    x2 = x2 + mlp_out

    out_ref[...] = x2.reshape(bn, Lp, D)


# ------------------------------ wrapper --------------------------------------

def _round_up(v, m):
    return ((v + m - 1) // m) * m


def _vmem_capacity_bytes():
    try:
        cap = int(getattr(pltpu.get_tpu_info(), "vmem_capacity_bytes", 0))
        if cap > 0:
            return cap
    except Exception:
        pass
    return 64 * 1024 * 1024        # conservative (v7x per-core physical)


def _vmem_estimate(bn, Lp, D, H):
    """Rough per-grid-step VMEM footprint (bytes) used to size block_n."""
    f32, bf16 = 4, 2
    tok = bn * Lp
    x_io = 3 * tok * D * f32                                   # x in (2-buf) + resident out
    w = 2 * (12 * D * D * bf16 + 16 * D * f32)                 # double-buffered layer weights
    attn_peak = (tok * 3 * D * (f32 + bf16)                    # qkv f32 + bf16 q/k/v
                 + H * bn * Lp * Lp * (f32 + bf16)             # scores f32 + probs bf16
                 + tok * D * (f32 + bf16))                     # o / o2
    mlp_peak = tok * 4 * D * (f32 + bf16) + tok * D * f32      # hfc f32+bf16 + out
    return x_io + w + 2 * Lp * Lp * f32 + max(attn_peak, mlp_peak)


def _pick_block_n(N, Lp, D, H, budget):
    cap = max(1, N // 2) if N > 1 else 1   # keep >= 2 batch tiles for megacore
    best = 1
    for d in range(1, N + 1):
        if N % d == 0 and d <= cap and _vmem_estimate(d, Lp, D, H) <= budget:
            best = d
    return best


def transformer_forward(x_lnd, layer_params, n_head, attn_mask=None,
                        block_n=None):
    """Equivalent of Transformer.forward.  x_lnd: (L, N, D) float32."""
    L, N, D = x_lnd.shape
    n_layers = len(layer_params)
    assert D % n_head == 0, "d_model must be divisible by n_head"

    # Lane/sublane-friendly padded sequence length (e.g. CLIP L=77 -> 128).
    Lp = _round_up(L, 128) if L > 64 else _round_up(L, 8)
    has_mask = (attn_mask is not None) or (Lp != L)

    x = jnp.transpose(x_lnd, (1, 0, 2)).astype(jnp.float32)      # (N, L, D)
    if Lp != L:
        x = jnp.pad(x, ((0, 0), (0, Lp - L), (0, 0)))

    mask = None
    if has_mask:
        base = (attn_mask.astype(jnp.float32) if attn_mask is not None
                else jnp.zeros((L, L), jnp.float32))
        if Lp != L:
            mask = jnp.zeros((Lp, Lp), jnp.float32)
            mask = mask.at[:L, :L].set(base)
            mask = mask.at[:L, L:].set(-jnp.inf)   # real queries never see pad keys
        else:
            mask = base

    # --- stack per-layer params, pre-transpose + bf16-cast matmul weights ---
    def stack(i):
        return jnp.stack([p[i] for p in layer_params], axis=0)

    ln1w, ln1b = stack(0), stack(1)                               # (Ly, 1, D)
    wqkv = jnp.swapaxes(stack(2), 1, 2)                           # (Ly, D, 3D) f32
    bqkv = stack(3)                                               # (Ly, 1, 3D)
    # Fold 1/sqrt(Hd) into the q columns once (outside the hot loop).
    scale = 1.0 / math.sqrt(D // n_head)
    col_scale = jnp.concatenate([jnp.full((D,), scale, jnp.float32),
                                 jnp.ones((2 * D,), jnp.float32)])
    wqkv = (wqkv * col_scale).astype(jnp.bfloat16)
    bqkv = bqkv * col_scale
    wo = jnp.swapaxes(stack(4), 1, 2).astype(jnp.bfloat16)        # (Ly, D, D)
    bo = stack(5)                                                 # (Ly, 1, D)
    ln2w, ln2b = stack(6), stack(7)                               # (Ly, 1, D)
    wfc = jnp.swapaxes(stack(8), 1, 2).astype(jnp.bfloat16)       # (Ly, D, 4D)
    bfc = stack(9)                                                # (Ly, 1, 4D)
    wproj = jnp.swapaxes(stack(10), 1, 2).astype(jnp.bfloat16)    # (Ly, 4D, D)
    bproj = stack(11)                                             # (Ly, 1, D)

    # Generation-aware VMEM limit and VMEM-driven batch tile.
    vmem_cap = _vmem_capacity_bytes()
    vmem_limit = max(56 * 1024 * 1024,
                     min(int(0.85 * vmem_cap), 110 * 1024 * 1024))
    if block_n is None:
        block_n = _pick_block_n(N, Lp, D, n_head, int(0.7 * vmem_limit))
    assert N % block_n == 0
    grid = (N // block_n, n_layers)

    xmap = lambda i, l: (i, 0, 0)        # batch-tiled, resident across layers
    mmap = lambda i, l: (0, 0)           # fully resident
    wmap = lambda i, l: (l, 0, 0)        # per-layer weight slice (prefetched)

    def w_spec(arr):
        return pl.BlockSpec((1,) + arr.shape[1:], wmap)

    weights = [ln1w, ln1b, wqkv, bqkv, wo, bo, ln2w, ln2b, wfc, bfc, wproj,
               bproj]
    inputs = [x]
    in_specs = [pl.BlockSpec((block_n, Lp, D), xmap)]
    if has_mask:
        inputs.append(mask)
        in_specs.append(pl.BlockSpec((Lp, Lp), mmap))
    inputs += weights
    in_specs += [w_spec(a) for a in weights]

    # TODO(synk): for very wide models on v7x, cap weight buffering with
    #             pl.Buffered(1) on wfc/wproj (or split attention / MLP).
    kernel = functools.partial(_transformer_kernel, n_head, has_mask)
    out = pl.pallas_call(
        kernel,
        out_shape=jax.ShapeDtypeStruct((N, Lp, D), jnp.float32),
        grid_spec=pltpu.PrefetchScalarGridSpec(
            num_scalar_prefetch=0,
            grid=grid,
            in_specs=in_specs,
            out_specs=pl.BlockSpec((block_n, Lp, D), xmap)),
        compiler_params=pltpu.CompilerParams(
            dimension_semantics=("parallel", "arbitrary"),
            vmem_limit_bytes=int(vmem_limit)),
    )(*inputs)

    if Lp != L:
        out = out[:, :L, :]
    return jnp.transpose(out, (1, 0, 2))              # back to (L, N, D)


# ----------------------- deterministic parameter init -----------------------

def init_params(key, width, layers):
    """Weights kept in PyTorch layouts (nn.MultiheadAttention / nn.Linear)."""
    D = width
    all_params = []
    for i in range(layers):
        ks = jax.random.split(jax.random.fold_in(key, i), 6)
        ln1w = jnp.ones((1, D), jnp.float32)
        ln1b = jnp.zeros((1, D), jnp.float32)
        wqkv = 0.02 * jax.random.normal(ks[0], (3 * D, D), jnp.float32)
        bqkv = 0.02 * jax.random.normal(ks[1], (1, 3 * D), jnp.float32)
        wo = 0.02 * jax.random.normal(ks[2], (D, D), jnp.float32)
        bo = jnp.zeros((1, D), jnp.float32)
        ln2w = jnp.ones((1, D), jnp.float32)
        ln2b = jnp.zeros((1, D), jnp.float32)
        wfc = 0.02 * jax.random.normal(ks[3], (4 * D, D), jnp.float32)
        bfc = 0.02 * jax.random.normal(ks[4], (1, 4 * D), jnp.float32)
        wproj = 0.02 * jax.random.normal(ks[5], (D, 4 * D), jnp.float32)
        bproj = jnp.zeros((1, D), jnp.float32)
        all_params.append((ln1w, ln1b, wqkv, bqkv, wo, bo,
                           ln2w, ln2b, wfc, bfc, wproj, bproj))
    return all_params


# --------------------------- pure-JAX reference ------------------------------

def _ref_ln(x, w, b, eps=1e-5):
    mu = x.mean(-1, keepdims=True)
    var = ((x - mu) ** 2).mean(-1, keepdims=True)
    return (x - mu) / jnp.sqrt(var + eps) * w + b


def _ref_block(x, p, n_head, attn_mask=None):
    L, N, D = x.shape
    Hd = D // n_head
    ln1w, ln1b, wqkv, bqkv, wo, bo, ln2w, ln2b, wfc, bfc, wproj, bproj = p
    xl = _ref_ln(x, ln1w, ln1b)
    qkv = xl @ wqkv.T + bqkv
    q, k, v = jnp.split(qkv, 3, axis=-1)
    q = q / jnp.sqrt(Hd)

    def heads(t):  # (L, N, D) -> (N*H, L, Hd)
        return t.reshape(L, N * n_head, Hd).transpose(1, 0, 2)

    qh, kh, vh = heads(q), heads(k), heads(v)
    s = qh @ kh.transpose(0, 2, 1)
    if attn_mask is not None:
        s = s + attn_mask
    a = jax.nn.softmax(s, axis=-1)
    o = (a @ vh).transpose(1, 0, 2).reshape(L, N, D)
    x = x + (o @ wo.T + bo)
    xl2 = _ref_ln(x, ln2w, ln2b)
    h = xl2 @ wfc.T + bfc
    h = h * jax.nn.sigmoid(1.702 * h)
    return x + (h @ wproj.T + bproj)


def ref_transformer(x, layer_params, n_head, attn_mask=None):
    for p in layer_params:
        x = _ref_block(x, p, n_head, attn_mask)
    return x


# ---------------------------------- main -------------------------------------

if __name__ == "__main__":
    # Transformer(width=32, layers=2, heads=4), input (seq=8, batch=2, width=32)
    L, N, D, HEADS, LAYERS = 8, 2, 32, 4, 2

    key = jax.random.PRNGKey(0)
    kx, kp = jax.random.split(key)
    x = jax.random.normal(kx, (L, N, D), jnp.float32)
    params = init_params(kp, D, LAYERS)

    # bf16 MXU operands + approx softmax reciprocal => loosened tolerance.
    TOL = dict(rtol=2e-2, atol=2e-2)

    # --- no attention mask (unmasked fast path: no mask input at all) ---
    out = jax.block_until_ready(transformer_forward(x, params, HEADS))
    ref = jax.block_until_ready(ref_transformer(x, params, HEADS))
    assert out.shape == (L, N, D) and out.dtype == jnp.float32
    np.testing.assert_allclose(np.asarray(out), np.asarray(ref), **TOL)

    # --- causal attention mask (CLIP text-tower style) ---
    causal = jnp.triu(jnp.full((L, L), -jnp.inf, jnp.float32), k=1)
    out_m = jax.block_until_ready(
        transformer_forward(x, params, HEADS, attn_mask=causal))
    ref_m = jax.block_until_ready(
        ref_transformer(x, params, HEADS, attn_mask=causal))
    np.testing.assert_allclose(np.asarray(out_m), np.asarray(ref_m), **TOL)

    # --- non-aligned sequence length exercises the padding + pad-mask path ---
    L2 = 6
    x2 = jax.random.normal(jax.random.fold_in(kx, 1), (L2, N, D), jnp.float32)
    out_p = jax.block_until_ready(transformer_forward(x2, params, HEADS))
    ref_p = jax.block_until_ready(ref_transformer(x2, params, HEADS))
    assert out_p.shape == (L2, N, D)
    np.testing.assert_allclose(np.asarray(out_p), np.asarray(ref_p), **TOL)

    print("KERNEL_OK")
</pallas_src>

<mosaic_0001>
module attributes {stable_mosaic.version = 11 : i64} {
  func.func @_transformer_kernel(%arg0: i32, %arg1: i32, %arg2: memref<1x8x32xf32, #tpu.memory_space<vmem>>, %arg3: memref<1x1x32xf32, #tpu.memory_space<vmem>>, %arg4: memref<1x1x32xf32, #tpu.memory_space<vmem>>, %arg5: memref<1x32x96xbf16, #tpu.memory_space<vmem>>, %arg6: memref<1x1x96xf32, #tpu.memory_space<vmem>>, %arg7: memref<1x32x32xbf16, #tpu.memory_space<vmem>>, %arg8: memref<1x1x32xf32, #tpu.memory_space<vmem>>, %arg9: memref<1x1x32xf32, #tpu.memory_space<vmem>>, %arg10: memref<1x1x32xf32, #tpu.memory_space<vmem>>, %arg11: memref<1x32x128xbf16, #tpu.memory_space<vmem>>, %arg12: memref<1x1x128xf32, #tpu.memory_space<vmem>>, %arg13: memref<1x128x32xbf16, #tpu.memory_space<vmem>>, %arg14: memref<1x1x32xf32, #tpu.memory_space<vmem>>, %arg15: memref<1x8x32xf32, #tpu.memory_space<vmem>>) attributes {dimension_semantics = [#tpu.dimension_semantics<parallel>, #tpu.dimension_semantics<arbitrary>], iteration_bounds = array<i64: 2, 2>, scalar_prefetch = 0 : i64, scratch_operands = 0 : i64, tpu.core_type = #tpu.core_type<tc>, window_params = [{transform_indices = @transform_0, window_bounds = array<i64: 1, 8, 32>}, {transform_indices = @transform_1, window_bounds = array<i64: 1, 1, 32>}, {transform_indices = @transform_2, window_bounds = array<i64: 1, 1, 32>}, {transform_indices = @transform_3, window_bounds = array<i64: 1, 32, 96>}, {transform_indices = @transform_4, window_bounds = array<i64: 1, 1, 96>}, {transform_indices = @transform_5, window_bounds = array<i64: 1, 32, 32>}, {transform_indices = @transform_6, window_bounds = array<i64: 1, 1, 32>}, {transform_indices = @transform_7, window_bounds = array<i64: 1, 1, 32>}, {transform_indices = @transform_8, window_bounds = array<i64: 1, 1, 32>}, {transform_indices = @transform_9, window_bounds = array<i64: 1, 32, 128>}, {transform_indices = @transform_10, window_bounds = array<i64: 1, 1, 128>}, {transform_indices = @transform_11, window_bounds = array<i64: 1, 128, 32>}, {transform_indices = @transform_12, window_bounds = array<i64: 1, 1, 32>}, {transform_indices = @transform_13, window_bounds = array<i64: 1, 8, 32>}]} {
    %c0_i32 = arith.constant 0 : i32
    %0 = arith.cmpi eq, %arg1, %c0_i32 : i32
    %1 = arith.extui %0 : i1 to i32
    %c0_i32_0 = arith.constant 0 : i32
    %2 = arith.cmpi ne, %1, %c0_i32_0 : i32
    scf.if %2 {
      %c0_61 = arith.constant 0 : index
      %c0_62 = arith.constant 0 : index
      %c0_63 = arith.constant 0 : index
      %137 = vector.load %arg2[%c0_61, %c0_62, %c0_63] : memref<1x8x32xf32, #tpu.memory_space<vmem>>, vector<1x8x32xf32>
      %c0_64 = arith.constant 0 : index
      %c0_65 = arith.constant 0 : index
      %c0_66 = arith.constant 0 : index
      %138 = vector.load %arg15[%c0_64, %c0_65, %c0_66] : memref<1x8x32xf32, #tpu.memory_space<vmem>>, vector<1x8x32xf32>
      tpu.vector_store %arg15[%c0_64, %c0_65, %c0_66], %137 {strides = array<i32>} : memref<1x8x32xf32, #tpu.memory_space<vmem>>, vector<1x8x32xf32>,
    } else {
    }
    %c0 = arith.constant 0 : index
    %c0_1 = arith.constant 0 : index
    %c0_2 = arith.constant 0 : index
    %3 = vector.load %arg15[%c0, %c0_1, %c0_2] : memref<1x8x32xf32, #tpu.memory_space<vmem>>, vector<1x8x32xf32>
    %4 = vector.shape_cast %3 : vector<1x8x32xf32> to vector<8x32xf32>
    %c0_3 = arith.constant 0 : index
    %c0_4 = arith.constant 0 : index
    %c0_5 = arith.constant 0 : index
    %5 = vector.load %arg3[%c0_3, %c0_4, %c0_5] : memref<1x1x32xf32, #tpu.memory_space<vmem>>, vector<1x1x32xf32>
    %6 = vector.shape_cast %5 : vector<1x1x32xf32> to vector<1x32xf32>
    %c0_6 = arith.constant 0 : index
    %c0_7 = arith.constant 0 : index
    %c0_8 = arith.constant 0 : index
    %7 = vector.load %arg4[%c0_6, %c0_7, %c0_8] : memref<1x1x32xf32, #tpu.memory_space<vmem>>, vector<1x1x32xf32>
    %8 = vector.shape_cast %7 : vector<1x1x32xf32> to vector<1x32xf32>
    %cst = arith.constant dense<0.000000e+00> : vector<8xf32>
    %9 = vector.multi_reduction <add>, %4, %cst [1] : vector<8x32xf32> to vector<8xf32>
    %10 = vector.shape_cast %9 : vector<8xf32> to vector<8x1xf32>
    %cst_9 = arith.constant 3.200000e+01 : f32
    %11 = vector.broadcast %cst_9 : f32 to vector<8x1xf32>
    %12 = arith.divf %10, %11 : vector<8x1xf32>
    %13 = vector.broadcast %12 : vector<8x1xf32> to vector<8x32xf32>
    %14 = arith.subf %4, %13 : vector<8x32xf32>
    %15 = arith.mulf %14, %14 : vector<8x32xf32>
    %cst_10 = arith.constant dense<0.000000e+00> : vector<8xf32>
    %16 = vector.multi_reduction <add>, %15, %cst_10 [1] : vector<8x32xf32> to vector<8xf32>
    %17 = vector.shape_cast %16 : vector<8xf32> to vector<8x1xf32>
    %cst_11 = arith.constant 3.200000e+01 : f32
    %18 = vector.broadcast %cst_11 : f32 to vector<8x1xf32>
    %19 = arith.divf %17, %18 : vector<8x1xf32>
    %20 = vector.broadcast %12 : vector<8x1xf32> to vector<8x32xf32>
    %21 = arith.subf %4, %20 : vector<8x32xf32>
    %cst_12 = arith.constant 9.99999974E-6 : f32
    %22 = vector.broadcast %cst_12 : f32 to vector<8x1xf32>
    %23 = arith.addf %19, %22 : vector<8x1xf32>
    %24 = math.rsqrt %23 : vector<8x1xf32>
    %25 = vector.broadcast %24 : vector<8x1xf32> to vector<8x32xf32>
    %26 = arith.mulf %21, %25 : vector<8x32xf32>
    %27 = vector.broadcast %6 : vector<1x32xf32> to vector<8x32xf32>
    %28 = arith.mulf %26, %27 : vector<8x32xf32>
    %29 = vector.broadcast %8 : vector<1x32xf32> to vector<8x32xf32>
    %30 = arith.addf %28, %29 : vector<8x32xf32>
    %31 = arith.truncf %30 : vector<8x32xf32> to vector<8x32xbf16>
    %c0_13 = arith.constant 0 : index
    %c0_14 = arith.constant 0 : index
    %c0_15 = arith.constant 0 : index
    %32 = vector.load %arg5[%c0_13, %c0_14, %c0_15] : memref<1x32x96xbf16, #tpu.memory_space<vmem>>, vector<1x32x96xbf16>
    %33 = vector.shape_cast %32 : vector<1x32x96xbf16> to vector<32x96xbf16>
    %cst_16 = arith.constant dense<0.000000e+00> : vector<8x96xf32>
    %34 = tpu.matmul %31, %33, %cst_16 {dimension_numbers = #tpu.dot_dimension_numbers<[1], [0], [0], [1], [0, 0, 1, 1], [], []>} : vector<8x32xbf16>, vector<32x96xbf16>, vector<8x96xf32> -> vector<8x96xf32>
    %c0_17 = arith.constant 0 : index
    %c0_18 = arith.constant 0 : index
    %c0_19 = arith.constant 0 : index
    %35 = vector.load %arg6[%c0_17, %c0_18, %c0_19] : memref<1x1x96xf32, #tpu.memory_space<vmem>>, vector<1x1x96xf32>
    %36 = vector.shape_cast %35 : vector<1x1x96xf32> to vector<1x96xf32>
    %37 = vector.broadcast %36 : vector<1x96xf32> to vector<8x96xf32>
    %38 = arith.addf %34, %37 : vector<8x96xf32>
    %39 = vector.shape_cast %38 : vector<8x96xf32> to vector<1x8x96xf32>
    %40 = arith.truncf %39 : vector<1x8x96xf32> to vector<1x8x96xbf16>
    %41 = vector.extract_strided_slice %40 {offsets = [0, 0, 0], sizes = [1, 8, 8], strides = [1, 1, 1]} : vector<1x8x96xbf16> to vector<1x8x8xbf16>
    %42 = vector.extract_strided_slice %40 {offsets = [0, 0, 8], sizes = [1, 8, 8], strides = [1, 1, 1]} : vector<1x8x96xbf16> to vector<1x8x8xbf16>
    %43 = vector.extract_strided_slice %40 {offsets = [0, 0, 16], sizes = [1, 8, 8], strides = [1, 1, 1]} : vector<1x8x96xbf16> to vector<1x8x8xbf16>
    %44 = vector.extract_strided_slice %40 {offsets = [0, 0, 24], sizes = [1, 8, 8], strides = [1, 1, 1]} : vector<1x8x96xbf16> to vector<1x8x8xbf16>
    %45 = tpu.concatenate %41, %42, %43, %44 in 0 : vector<1x8x8xbf16>, vector<1x8x8xbf16>, vector<1x8x8xbf16>, vector<1x8x8xbf16> -> vector<4x8x8xbf16>
    %46 = vector.extract_strided_slice %40 {offsets = [0, 0, 32], sizes = [1, 8, 8], strides = [1, 1, 1]} : vector<1x8x96xbf16> to vector<1x8x8xbf16>
    %47 = vector.extract_strided_slice %40 {offsets = [0, 0, 40], sizes = [1, 8, 8], strides = [1, 1, 1]} : vector<1x8x96xbf16> to vector<1x8x8xbf16>
    %48 = vector.extract_strided_slice %40 {offsets = [0, 0, 48], sizes = [1, 8, 8], strides = [1, 1, 1]} : vector<1x8x96xbf16> to vector<1x8x8xbf16>
    %49 = vector.extract_strided_slice %40 {offsets = [0, 0, 56], sizes = [1, 8, 8], strides = [1, 1, 1]} : vector<1x8x96xbf16> to vector<1x8x8xbf16>
    %50 = tpu.concatenate %46, %47, %48, %49 in 0 : vector<1x8x8xbf16>, vector<1x8x8xbf16>, vector<1x8x8xbf16>, vector<1x8x8xbf16> -> vector<4x8x8xbf16>
    %51 = vector.extract_strided_slice %40 {offsets = [0, 0, 64], sizes = [1, 8, 8], strides = [1, 1, 1]} : vector<1x8x96xbf16> to vector<1x8x8xbf16>
    %52 = vector.extract_strided_slice %40 {offsets = [0, 0, 72], sizes = [1, 8, 8], strides = [1, 1, 1]} : vector<1x8x96xbf16> to vector<1x8x8xbf16>
    %53 = vector.extract_strided_slice %40 {offsets = [0, 0, 80], sizes = [1, 8, 8], strides = [1, 1, 1]} : vector<1x8x96xbf16> to vector<1x8x8xbf16>
    %54 = vector.extract_strided_slice %40 {offsets = [0, 0, 88], sizes = [1, 8, 8], strides = [1, 1, 1]} : vector<1x8x96xbf16> to vector<1x8x8xbf16>
    %55 = tpu.concatenate %51, %52, %53, %54 in 0 : vector<1x8x8xbf16>, vector<1x8x8xbf16>, vector<1x8x8xbf16>, vector<1x8x8xbf16> -> vector<4x8x8xbf16>
    "tpu.trace_start"() <{level = 10 : i32, message = "bld,bmd->blm"}> : () -> ()
    %cst_20 = arith.constant dense<0.000000e+00> : vector<4x8x8xf32>
    %56 = tpu.matmul %45, %50, %cst_20 {dimension_numbers = #tpu.dot_dimension_numbers<[2], [2], [1], [1], [0, 0, 0, 1, 1, 1], [0], [0]>} : vector<4x8x8xbf16>, vector<4x8x8xbf16>, vector<4x8x8xf32> -> vector<4x8x8xf32>
    "tpu.trace_stop"() : () -> ()
    %cst_21 = arith.constant dense<0xFF800000> : vector<4x8xf32>
    %57 = vector.multi_reduction <maximumf>, %56, %cst_21 [2] : vector<4x8x8xf32> to vector<4x8xf32>
    %58 = vector.shape_cast %57 : vector<4x8xf32> to vector<4x8x1xf32>
    %59 = vector.broadcast %58 : vector<4x8x1xf32> to vector<4x8x8xf32>
    %60 = arith.subf %56, %59 : vector<4x8x8xf32>
    %61 = math.exp %60 : vector<4x8x8xf32>
    %cst_22 = arith.constant dense<0.000000e+00> : vector<4x8xf32>
    %62 = vector.multi_reduction <add>, %61, %cst_22 [2] : vector<4x8x8xf32> to vector<4x8xf32>
    %63 = vector.shape_cast %62 : vector<4x8xf32> to vector<4x8x1xf32>
    %64 = tpu.reciprocal %63 {approx = true} : vector<4x8x1xf32> -> vector<4x8x1xf32>
    %65 = vector.broadcast %64 : vector<4x8x1xf32> to vector<4x8x8xf32>
    %66 = arith.mulf %61, %65 : vector<4x8x8xf32>
    %67 = arith.truncf %66 : vector<4x8x8xf32> to vector<4x8x8xbf16>
    "tpu.trace_start"() <{level = 10 : i32, message = "blm,bmd->bld"}> : () -> ()
    %cst_23 = arith.constant dense<0.000000e+00> : vector<4x8x8xf32>
    %68 = tpu.matmul %67, %55, %cst_23 {dimension_numbers = #tpu.dot_dimension_numbers<[2], [1], [1], [2], [0, 0, 0, 1, 1, 2], [0], [0]>} : vector<4x8x8xbf16>, vector<4x8x8xbf16>, vector<4x8x8xf32> -> vector<4x8x8xf32>
    "tpu.trace_stop"() : () -> ()
    %69 = arith.truncf %68 : vector<4x8x8xf32> to vector<4x8x8xbf16>
    %70 = vector.extract_strided_slice %69 {offsets = [0, 0, 0], sizes = [1, 8, 8], strides = [1, 1, 1]} : vector<4x8x8xbf16> to vector<1x8x8xbf16>
    %71 = vector.extract_strided_slice %69 {offsets = [1, 0, 0], sizes = [1, 8, 8], strides = [1, 1, 1]} : vector<4x8x8xbf16> to vector<1x8x8xbf16>
    %72 = vector.extract_strided_slice %69 {offsets = [2, 0, 0], sizes = [1, 8, 8], strides = [1, 1, 1]} : vector<4x8x8xbf16> to vector<1x8x8xbf16>
    %73 = vector.extract_strided_slice %69 {offsets = [3, 0, 0], sizes = [1, 8, 8], strides = [1, 1, 1]} : vector<4x8x8xbf16> to vector<1x8x8xbf16>
    %74 = tpu.concatenate %70, %71, %72, %73 in 2 : vector<1x8x8xbf16>, vector<1x8x8xbf16>, vector<1x8x8xbf16>, vector<1x8x8xbf16> -> vector<1x8x32xbf16>
    %75 = vector.shape_cast %74 : vector<1x8x32xbf16> to vector<8x32xbf16>
    %c0_24 = arith.constant 0 : index
    %c0_25 = arith.constant 0 : index
    %c0_26 = arith.constant 0 : index
    %76 = vector.load %arg7[%c0_24, %c0_25, %c0_26] : memref<1x32x32xbf16, #tpu.memory_space<vmem>>, vector<1x32x32xbf16>
    %77 = vector.shape_cast %76 : vector<1x32x32xbf16> to vector<32x32xbf16>
    %cst_27 = arith.constant dense<0.000000e+00> : vector<8x32xf32>
    %78 = tpu.matmul %75, %77, %cst_27 {dimension_numbers = #tpu.dot_dimension_numbers<[1], [0], [0], [1], [0, 0, 1, 1], [], []>} : vector<8x32xbf16>, vector<32x32xbf16>, vector<8x32xf32> -> vector<8x32xf32>
    %c0_28 = arith.constant 0 : index
    %c0_29 = arith.constant 0 : index
    %c0_30 = arith.constant 0 : index
    %79 = vector.load %arg8[%c0_28, %c0_29, %c0_30] : memref<1x1x32xf32, #tpu.memory_space<vmem>>, vector<1x1x32xf32>
    %80 = vector.shape_cast %79 : vector<1x1x32xf32> to vector<1x32xf32>
    %81 = vector.broadcast %80 : vector<1x32xf32> to vector<8x32xf32>
    %82 = arith.addf %78, %81 : vector<8x32xf32>
    %83 = arith.addf %4, %82 : vector<8x32xf32>
    %c0_31 = arith.constant 0 : index
    %c0_32 = arith.constant 0 : index
    %c0_33 = arith.constant 0 : index
    %84 = vector.load %arg9[%c0_31, %c0_32, %c0_33] : memref<1x1x32xf32, #tpu.memory_space<vmem>>, vector<1x1x32xf32>
    %85 = vector.shape_cast %84 : vector<1x1x32xf32> to vector<1x32xf32>
    %c0_34 = arith.constant 0 : index
    %c0_35 = arith.constant 0 : index
    %c0_36 = arith.constant 0 : index
    %86 = vector.load %arg10[%c0_34, %c0_35, %c0_36] : memref<1x1x32xf32, #tpu.memory_space<vmem>>, vector<1x1x32xf32>
    %87 = vector.shape_cast %86 : vector<1x1x32xf32> to vector<1x32xf32>
    %cst_37 = arith.constant dense<0.000000e+00> : vector<8xf32>
    %88 = vector.multi_reduction <add>, %83, %cst_37 [1] : vector<8x32xf32> to vector<8xf32>
    %89 = vector.shape_cast %88 : vector<8xf32> to vector<8x1xf32>
    %cst_38 = arith.constant 3.200000e+01 : f32
    %90 = vector.broadcast %cst_38 : f32 to vector<8x1xf32>
    %91 = arith.divf %89, %90 : vector<8x1xf32>
    %92 = vector.broadcast %91 : vector<8x1xf32> to vector<8x32xf32>
    %93 = arith.subf %83, %92 : vector<8x32xf32>
    %94 = arith.mulf %93, %93 : vector<8x32xf32>
    %cst_39 = arith.constant dense<0.000000e+00> : vector<8xf32>
    %95 = vector.multi_reduction <add>, %94, %cst_39 [1] : vector<8x32xf32> to vector<8xf32>
    %96 = vector.shape_cast %95 : vector<8xf32> to vector<8x1xf32>
    %cst_40 = arith.constant 3.200000e+01 : f32
    %97 = vector.broadcast %cst_40 : f32 to vector<8x1xf32>
    %98 = arith.divf %96, %97 : vector<8x1xf32>
    %99 = vector.broadcast %91 : vector<8x1xf32> to vector<8x32xf32>
    %100 = arith.subf %83, %99 : vector<8x32xf32>
    %cst_41 = arith.constant 9.99999974E-6 : f32
    %101 = vector.broadcast %cst_41 : f32 to vector<8x1xf32>
    %102 = arith.addf %98, %101 : vector<8x1xf32>
    %103 = math.rsqrt %102 : vector<8x1xf32>
    %104 = vector.broadcast %103 : vector<8x1xf32> to vector<8x32xf32>
    %105 = arith.mulf %100, %104 : vector<8x32xf32>
    %106 = vector.broadcast %85 : vector<1x32xf32> to vector<8x32xf32>
    %107 = arith.mulf %105, %106 : vector<8x32xf32>
    %108 = vector.broadcast %87 : vector<1x32xf32> to vector<8x32xf32>
    %109 = arith.addf %107, %108 : vector<8x32xf32>
    %110 = arith.truncf %109 : vector<8x32xf32> to vector<8x32xbf16>
    %c0_42 = arith.constant 0 : index
    %c0_43 = arith.constant 0 : index
    %c0_44 = arith.constant 0 : index
    %111 = vector.load %arg11[%c0_42, %c0_43, %c0_44] : memref<1x32x128xbf16, #tpu.memory_space<vmem>>, vector<1x32x128xbf16>
    %112 = vector.shape_cast %111 : vector<1x32x128xbf16> to vector<32x128xbf16>
    %cst_45 = arith.constant dense<0.000000e+00> : vector<8x128xf32>
    %113 = tpu.matmul %110, %112, %cst_45 {dimension_numbers = #tpu.dot_dimension_numbers<[1], [0], [0], [1], [0, 0, 1, 1], [], []>} : vector<8x32xbf16>, vector<32x128xbf16>, vector<8x128xf32> -> vector<8x128xf32>
    %c0_46 = arith.constant 0 : index
    %c0_47 = arith.constant 0 : index
    %c0_48 = arith.constant 0 : index
    %114 = vector.load %arg12[%c0_46, %c0_47, %c0_48] : memref<1x1x128xf32, #tpu.memory_space<vmem>>, vector<1x1x128xf32>
    %115 = vector.shape_cast %114 : vector<1x1x128xf32> to vector<1x128xf32>
    %116 = vector.broadcast %115 : vector<1x128xf32> to vector<8x128xf32>
    %117 = arith.addf %113, %116 : vector<8x128xf32>
    %cst_49 = arith.constant 1.702000e+00 : f32
    %118 = vector.broadcast %cst_49 : f32 to vector<8x128xf32>
    %119 = arith.mulf %118, %117 : vector<8x128xf32>
    %120 = arith.negf %119 : vector<8x128xf32>
    %121 = math.exp %120 : vector<8x128xf32>
    %cst_50 = arith.constant 1.000000e+00 : f32
    %122 = vector.broadcast %cst_50 : f32 to vector<8x128xf32>
    %123 = arith.addf %122, %121 : vector<8x128xf32>
    %124 = arith.divf %122, %123 : vector<8x128xf32>
    %125 = arith.mulf %117, %124 : vector<8x128xf32>
    %126 = arith.truncf %125 : vector<8x128xf32> to vector<8x128xbf16>
    %c0_51 = arith.constant 0 : index
    %c0_52 = arith.constant 0 : index
    %c0_53 = arith.constant 0 : index
    %127 = vector.load %arg13[%c0_51, %c0_52, %c0_53] : memref<1x128x32xbf16, #tpu.memory_space<vmem>>, vector<1x128x32xbf16>
    %128 = vector.shape_cast %127 : vector<1x128x32xbf16> to vector<128x32xbf16>
    %cst_54 = arith.constant dense<0.000000e+00> : vector<8x32xf32>
    %129 = tpu.matmul %126, %128, %cst_54 {dimension_numbers = #tpu.dot_dimension_numbers<[1], [0], [0], [1], [0, 0, 1, 1], [], []>} : vector<8x128xbf16>, vector<128x32xbf16>, vector<8x32xf32> -> vector<8x32xf32>
    %c0_55 = arith.constant 0 : index
    %c0_56 = arith.constant 0 : index
    %c0_57 = arith.constant 0 : index
    %130 = vector.load %arg14[%c0_55, %c0_56, %c0_57] : memref<1x1x32xf32, #tpu.memory_space<vmem>>, vector<1x1x32xf32>
    %131 = vector.shape_cast %130 : vector<1x1x32xf32> to vector<1x32xf32>
    %132 = vector.broadcast %131 : vector<1x32xf32> to vector<8x32xf32>
    %133 = arith.addf %129, %132 : vector<8x32xf32>
    %134 = arith.addf %83, %133 : vector<8x32xf32>
    %135 = vector.shape_cast %134 : vector<8x32xf32> to vector<1x8x32xf32>
    %c0_58 = arith.constant 0 : index
    %c0_59 = arith.constant 0 : index
    %c0_60 = arith.constant 0 : index
    %136 = vector.load %arg15[%c0_58, %c0_59, %c0_60] : memref<1x8x32xf32, #tpu.memory_space<vmem>>, vector<1x8x32xf32>
    tpu.vector_store %arg15[%c0_58, %c0_59, %c0_60], %135 {strides = array<i32>} : memref<1x8x32xf32, #tpu.memory_space<vmem>>, vector<1x8x32xf32>,
    return
  }
  func.func @transform_0(%arg0: i32, %arg1: i32) -> (i32, i32, i32) {
    %c0_i32 = arith.constant 0 : i32
    %c0_i32_0 = arith.constant 0 : i32
    %c0_i32_1 = arith.constant 0 : i32
    return %arg0, %c0_i32, %c0_i32_0 : i32, i32, i32
  }
  func.func @transform_1(%arg0: i32, %arg1: i32) -> (i32, i32, i32) {
    %c0_i32 = arith.constant 0 : i32
    %c0_i32_0 = arith.constant 0 : i32
    %c0_i32_1 = arith.constant 0 : i32
    return %arg1, %c0_i32, %c0_i32_0 : i32, i32, i32
  }
  func.func @transform_2(%arg0: i32, %arg1: i32) -> (i32, i32, i32) {
    %c0_i32 = arith.constant 0 : i32
    %c0_i32_0 = arith.constant 0 : i32
    %c0_i32_1 = arith.constant 0 : i32
    return %arg1, %c0_i32, %c0_i32_0 : i32, i32, i32
  }
  func.func @transform_3(%arg0: i32, %arg1: i32) -> (i32, i32, i32) {
    %c0_i32 = arith.constant 0 : i32
    %c0_i32_0 = arith.constant 0 : i32
    %c0_i32_1 = arith.constant 0 : i32
    return %arg1, %c0_i32, %c0_i32_0 : i32, i32, i32
  }
  func.func @transform_4(%arg0: i32, %arg1: i32) -> (i32, i32, i32) {
    %c0_i32 = arith.constant 0 : i32
    %c0_i32_0 = arith.constant 0 : i32
    %c0_i32_1 = arith.constant 0 : i32
    return %arg1, %c0_i32, %c0_i32_0 : i32, i32, i32
  }
  func.func @transform_5(%arg0: i32, %arg1: i32) -> (i32, i32, i32) {
    %c0_i32 = arith.constant 0 : i32
    %c0_i32_0 = arith.constant 0 : i32
    %c0_i32_1 = arith.constant 0 : i32
    return %arg1, %c0_i32, %c0_i32_0 : i32, i32, i32
  }
  func.func @transform_6(%arg0: i32, %arg1: i32) -> (i32, i32, i32) {
    %c0_i32 = arith.constant 0 : i32
    %c0_i32_0 = arith.constant 0 : i32
    %c0_i32_1 = arith.constant 0 : i32
    return %arg1, %c0_i32, %c0_i32_0 : i32, i32, i32
  }
  func.func @transform_7(%arg0: i32, %arg1: i32) -> (i32, i32, i32) {
    %c0_i32 = arith.constant 0 : i32
    %c0_i32_0 = arith.constant 0 : i32
    %c0_i32_1 = arith.constant 0 : i32
    return %arg1, %c0_i32, %c0_i32_0 : i32, i32, i32
  }
  func.func @transform_8(%arg0: i32, %arg1: i32) -> (i32, i32, i32) {
    %c0_i32 = arith.constant 0 : i32
    %c0_i32_0 = arith.constant 0 : i32
    %c0_i32_1 = arith.constant 0 : i32
    return %arg1, %c0_i32, %c0_i32_0 : i32, i32, i32
  }
  func.func @transform_9(%arg0: i32, %arg1: i32) -> (i32, i32, i32) {
    %c0_i32 = arith.constant 0 : i32
    %c0_i32_0 = arith.constant 0 : i32
    %c0_i32_1 = arith.constant 0 : i32
    return %arg1, %c0_i32, %c0_i32_0 : i32, i32, i32
  }
  func.func @transform_10(%arg0: i32, %arg1: i32) -> (i32, i32, i32) {
    %c0_i32 = arith.constant 0 : i32
    %c0_i32_0 = arith.constant 0 : i32
    %c0_i32_1 = arith.constant 0 : i32
    return %arg1, %c0_i32, %c0_i32_0 : i32, i32, i32
  }
  func.func @transform_11(%arg0: i32, %arg1: i32) -> (i32, i32, i32) {
    %c0_i32 = arith.constant 0 : i32
    %c0_i32_0 = arith.constant 0 : i32
    %c0_i32_1 = arith.constant 0 : i32
    return %arg1, %c0_i32, %c0_i32_0 : i32, i32, i32
  }
  func.func @transform_12(%arg0: i32, %arg1: i32) -> (i32, i32, i32) {
    %c0_i32 = arith.constant 0 : i32
    %c0_i32_0 = arith.constant 0 : i32
    %c0_i32_1 = arith.constant 0 : i32
    return %arg1, %c0_i32, %c0_i32_0 : i32, i32, i32
  }
  func.func @transform_13(%arg0: i32, %arg1: i32) -> (i32, i32, i32) {
    %c0_i32 = arith.constant 0 : i32
    %c0_i32_0 = arith.constant 0 : i32
    %c0_i32_1 = arith.constant 0 : i32
    return %arg0, %c0_i32, %c0_i32_0 : i32, i32, i32
  }
}

</mosaic_0001>

<llo_original>
// kernel: tpu_custom_call.1
$region0: #{tpu_custom_call.1}
  #allocation0 [shape = 'u32[]', space=smem, size = 0x4, offset = 0x4, fixed_abs, tag = 'smem constant byte address 0x4 - core index']
  #allocation1 [shape = 'u32[144,128]{1,0:T(1,128)}', space=vmem, size = 0x12000, scoped, tag = 'internal scratch']
  %s0 = inlined_call_operand.vmem [shape: f32[2,8,32], index: 0, kind: input, shape index: {}]
  %s1 = inlined_call_operand.vmem [shape: f32[2,1,32], index: 1, kind: input, shape index: {}]
  %s2 = inlined_call_operand.vmem [shape: f32[2,1,32], index: 2, kind: input, shape index: {}]
  %s3 = inlined_call_operand.vmem [shape: bf16[2,32,96], index: 3, kind: input, shape index: {}]
  %s4 = inlined_call_operand.vmem [shape: f32[2,1,96], index: 4, kind: input, shape index: {}]
  %s5 = inlined_call_operand.vmem [shape: bf16[2,32,32], index: 5, kind: input, shape index: {}]
  %s6 = inlined_call_operand.vmem [shape: f32[2,1,32], index: 6, kind: input, shape index: {}]
  %s7 = inlined_call_operand.vmem [shape: f32[2,1,32], index: 7, kind: input, shape index: {}]
  %s8 = inlined_call_operand.vmem [shape: f32[2,1,32], index: 8, kind: input, shape index: {}]
  %s9 = inlined_call_operand.vmem [shape: bf16[2,32,128], index: 9, kind: input, shape index: {}]
  %s10 = inlined_call_operand.vmem [shape: f32[2,1,128], index: 10, kind: input, shape index: {}]
  %s11 = inlined_call_operand.vmem [shape: bf16[2,128,32], index: 11, kind: input, shape index: {}]
  %s12 = inlined_call_operand.vmem [shape: f32[2,1,32], index: 12, kind: input, shape index: {}]
  %s13 = inlined_call_operand.hbm [shape: f32[2,8,32], index: 13, kind: output, shape index: {}]
  %s14 = sld [smem:[#allocation0]]
  $region89: #{tpu_custom_call.1} parent=0
    _
  %s16 = ssub.s32 1, %s14
  %s17 = scalar_select 0, %s16, %s14
  $region1: #{tpu_custom_call.1} parent=0
    #allocation2 [shape = 'u8[8192]{0}', space=vmem, size = 0x2000, scoped, tag = 'output window, operand 0']
    #allocation3 [shape = 's32[2]{0}', space=sflag, size = 0x8, scoped, tag = 'scoped memory for tpu_custom_call.1']
    %18 = vsyncpa [#allocation3], 0
    %s19 = scalar_lea.sflag [#allocation3], 1
    %20 = vsyncpa %s19, 0
    loop: start=0, step=1, limit=6
    $region2: #{tpu_custom_call.1} parent=1 // loop_pre_header
      _
    $region3: #{tpu_custom_call.1} parent=1 // loop_header
      %s22 = sphi 0, %s26
      %p23 = scmp.ge.s32.totalorder %s22, 6
      %s29 = sphi 0, %s41
      %s30 = sphi 0, %s37
      %s31 = sphi 0, %s29
      %s32 = sphi 0, %s30
      %s33 = sphi 0, %s31
      %s34 = sphi 0, %s32
      %s44 = sphi 0, %s46
      %s47 = sphi 0, %s44
      %s48 = sphi 0, %s47
      %s64 = sphi 0, %s48
      %s70 = sphi 0, %s72
      %s73 = sphi 0, %s70
      %s74 = sphi 0, %s73
      %s90 = sphi 0, %s74
      %s96 = sphi 0, %s98
      %s99 = sphi 0, %s96
      %s100 = sphi 0, %s99
      %s116 = sphi 0, %s100
      %s122 = sphi 0, %s124
      %s125 = sphi 0, %s122
      %s126 = sphi 0, %s125
      %s142 = sphi 0, %s126
      %s148 = sphi 0, %s150
      %s151 = sphi 0, %s148
      %s152 = sphi 0, %s151
      %s168 = sphi 0, %s152
      %s174 = sphi 0, %s176
      %s177 = sphi 0, %s174
      %s178 = sphi 0, %s177
      %s194 = sphi 0, %s178
      %s200 = sphi 0, %s202
      %s203 = sphi 0, %s200
      %s204 = sphi 0, %s203
      %s220 = sphi 0, %s204
      %s226 = sphi 0, %s228
      %s229 = sphi 0, %s226
      %s230 = sphi 0, %s229
      %s246 = sphi 0, %s230
      %s252 = sphi 0, %s254
      %s255 = sphi 0, %s252
      %s256 = sphi 0, %s255
      %s272 = sphi 0, %s256
      %s278 = sphi 0, %s280
      %s281 = sphi 0, %s278
      %s282 = sphi 0, %s281
      %s298 = sphi 0, %s282
      %s304 = sphi 0, %s306
      %s307 = sphi 0, %s304
      %s308 = sphi 0, %s307
      %s324 = sphi 0, %s308
      %s330 = sphi 0, %s332
      %s333 = sphi 0, %s330
      %s334 = sphi 0, %s333
      %s350 = sphi 0, %s334
      %s356 = sphi 0, %s358
      %s359 = sphi 0, %s356
      %s360 = sphi 0, %s359
      %s376 = sphi 0, %s360
      %s382 = sphi 0, %s384
      %s385 = sphi 0, %s382
      %s386 = sphi 0, %s385
      %s402 = sphi 0, %s386
    $region4: #{tpu_custom_call.1} parent=1 // loop_header_branch
      %25 = sbr.rel (%p23) target = $region8
    $region5: #{tpu_custom_call.1} parent=1 // loop_body
      %s27 = ssub.s32 %s22, 1
      %s28 = ssub.s32 %s22, 2
      %s35 = sadd.s32 1, %s30
      %p36 = scmp.ge.s32.totalorder %s35, 2
      %s37 = scalar_select %p36, 0, %s35
      %s38 = sadd.s32 1, %s29
      %s39 = scalar_select %p36, %s38, %s29
      %p40 = scmp.ge.s32.totalorder %s39, 2
      %s41 = scalar_select %p40, 0, %s39
      %s42 = ssub.s32 %s29, %s41
      %p43 = scmp.eq.s32.totalorder %s42, 0
      %s45 = sadd.s32 %s44, 1
      %s46 = scalar_select %p43, %s44, %s45
      %p49 = pneg %p43
      %p50 = scmp.eq.s32.totalorder %s22, 3
      %p51 = por %p49, %p50
      %p52 = scmp.ne.s32.totalorder %s44, %s47
      %p53 = scmp.eq.s32.totalorder %s22, 0
      %p54 = por %p52, %p53
      %p55 = scmp.ne.s32.totalorder %s44, %s47
      %p56 = scmp.eq.s32.totalorder %s27, 3
      %p57 = por %p55, %p56
      %p58 = scmp.ne.s32.totalorder %s47, %s48
      %p59 = scmp.eq.s32.totalorder %s27, 0
      %p60 = por %p58, %p59
      %p61 = scmp.ne.s32.totalorder %s47, %s48
      %p62 = scmp.eq.s32.totalorder %s28, 3
      %p63 = por %p61, %p62
      %p65 = scmp.ne.s32.totalorder %s48, %s64
      %p66 = scmp.eq.s32.totalorder %s28, 0
      %p67 = por %p65, %p66
      %s68 = ssub.s32 %s30, %s37
      %p69 = scmp.eq.s32.totalorder %s68, 0
      %s71 = sadd.s32 %s70, 1
      %s72 = scalar_select %p69, %s70, %s71
      %p75 = pneg %p69
      %p76 = scmp.eq.s32.totalorder %s22, 3
      %p77 = por %p75, %p76
      %p78 = scmp.ne.s32.totalorder %s70, %s73
      %p79 = scmp.eq.s32.totalorder %s22, 0
      %p80 = por %p78, %p79
      %p81 = scmp.ne.s32.totalorder %s70, %s73
      %p82 = scmp.eq.s32.totalorder %s27, 3
      %p83 = por %p81, %p82
      %p84 = scmp.ne.s32.totalorder %s73, %s74
      %p85 = scmp.eq.s32.totalorder %s27, 0
      %p86 = por %p84, %p85
      %p87 = scmp.ne.s32.totalorder %s73, %s74
      %p88 = scmp.eq.s32.totalorder %s28, 3
      %p89 = por %p87, %p88
      %p91 = scmp.ne.s32.totalorder %s74, %s90
      %p92 = scmp.eq.s32.totalorder %s28, 0
      %p93 = por %p91, %p92
      %s94 = ssub.s32 %s30, %s37
      %p95 = scmp.eq.s32.totalorder %s94, 0
      %s97 = sadd.s32 %s96, 1
      %s98 = scalar_select %p95, %s96, %s97
      %p101 = pneg %p95
      %p102 = scmp.eq.s32.totalorder %s22, 3
      %p103 = por %p101, %p102
      %p104 = scmp.ne.s32.totalorder %s96, %s99
      %p105 = scmp.eq.s32.totalorder %s22, 0
      %p106 = por %p104, %p105
      %p107 = scmp.ne.s32.totalorder %s96, %s99
      %p108 = scmp.eq.s32.totalorder %s27, 3
      %p109 = por %p107, %p108
      %p110 = scmp.ne.s32.totalorder %s99, %s100
      %p111 = scmp.eq.s32.totalorder %s27, 0
      %p112 = por %p110, %p111
      %p113 = scmp.ne.s32.totalorder %s99, %s100
      %p114 = scmp.eq.s32.totalorder %s28, 3
      %p115 = por %p113, %p114
      %p117 = scmp.ne.s32.totalorder %s100, %s116
      %p118 = scmp.eq.s32.totalorder %s28, 0
      %p119 = por %p117, %p118
      %s120 = ssub.s32 %s30, %s37
      %p121 = scmp.eq.s32.totalorder %s120, 0
      %s123 = sadd.s32 %s122, 1
      %s124 = scalar_select %p121, %s122, %s123
      %p127 = pneg %p121
      %p128 = scmp.eq.s32.totalorder %s22, 3
      %p129 = por %p127, %p128
      %p130 = scmp.ne.s32.totalorder %s122, %s125
      %p131 = scmp.eq.s32.totalorder %s22, 0
      %p132 = por %p130, %p131
      %p133 = scmp.ne.s32.totalorder %s122, %s125
      %p134 = scmp.eq.s32.totalorder %s27, 3
      %p135 = por %p133, %p134
      %p136 = scmp.ne.s32.totalorder %s125, %s126
      %p137 = scmp.eq.s32.totalorder %s27, 0
      %p138 = por %p136, %p137
      %p139 = scmp.ne.s32.totalorder %s125, %s126
      %p140 = scmp.eq.s32.totalorder %s28, 3
      %p141 = por %p139, %p140
      %p143 = scmp.ne.s32.totalorder %s126, %s142
      %p144 = scmp.eq.s32.totalorder %s28, 0
      %p145 = por %p143, %p144
      %s146 = ssub.s32 %s30, %s37
      %p147 = scmp.eq.s32.totalorder %s146, 0
      %s149 = sadd.s32 %s148, 1
      %s150 = scalar_select %p147, %s148, %s149
      %p153 = pneg %p147
      %p154 = scmp.eq.s32.totalorder %s22, 3
      %p155 = por %p153, %p154
      %p156 = scmp.ne.s32.totalorder %s148, %s151
      %p157 = scmp.eq.s32.totalorder %s22, 0
      %p158 = por %p156, %p157
      %p159 = scmp.ne.s32.totalorder %s148, %s151
      %p160 = scmp.eq.s32.totalorder %s27, 3
      %p161 = por %p159, %p160
      %p162 = scmp.ne.s32.totalorder %s151, %s152
      %p163 = scmp.eq.s32.totalorder %s27, 0
      %p164 = por %p162, %p163
      %p165 = scmp.ne.s32.totalorder %s151, %s152
      %p166 = scmp.eq.s32.totalorder %s28, 3
      %p167 = por %p165, %p166
      %p169 = scmp.ne.s32.totalorder %s152, %s168
      %p170 = scmp.eq.s32.totalorder %s28, 0
      %p171 = por %p169, %p170
      %s172 = ssub.s32 %s30, %s37
      %p173 = scmp.eq.s32.totalorder %s172, 0
      %s175 = sadd.s32 %s174, 1
      %s176 = scalar_select %p173, %s174, %s175
      %p179 = pneg %p173
      %p180 = scmp.eq.s32.totalorder %s22, 3
      %p181 = por %p179, %p180
      %p182 = scmp.ne.s32.totalorder %s174, %s177
      %p183 = scmp.eq.s32.totalorder %s22, 0
      %p184 = por %p182, %p183
      %p185 = scmp.ne.s32.totalorder %s174, %s177
      %p186 = scmp.eq.s32.totalorder %s27, 3
      %p187 = por %p185, %p186
      %p188 = scmp.ne.s32.totalorder %s177, %s178
      %p189 = scmp.eq.s32.totalorder %s27, 0
      %p190 = por %p188, %p189
      %p191 = scmp.ne.s32.totalorder %s177, %s178
      %p192 = scmp.eq.s32.totalorder %s28, 3
      %p193 = por %p191, %p192
      %p195 = scmp.ne.s32.totalorder %s178, %s194
      %p196 = scmp.eq.s32.totalorder %s28, 0
      %p197 = por %p195, %p196
      %s198 = ssub.s32 %s30, %s37
      %p199 = scmp.eq.s32.totalorder %s198, 0
      %s201 = sadd.s32 %s200, 1
      %s202 = scalar_select %p199, %s200, %s201
      %p205 = pneg %p199
      %p206 = scmp.eq.s32.totalorder %s22, 3
      %p207 = por %p205, %p206
      %p208 = scmp.ne.s32.totalorder %s200, %s203
      %p209 = scmp.eq.s32.totalorder %s22, 0
      %p210 = por %p208, %p209
      %p211 = scmp.ne.s32.totalorder %s200, %s203
      %p212 = scmp.eq.s32.totalorder %s27, 3
      %p213 = por %p211, %p212
      %p214 = scmp.ne.s32.totalorder %s203, %s204
      %p215 = scmp.eq.s32.totalorder %s27, 0
      %p216 = por %p214, %p215
      %p217 = scmp.ne.s32.totalorder %s203, %s204
      %p218 = scmp.eq.s32.totalorder %s28, 3
      %p219 = por %p217, %p218
      %p221 = scmp.ne.s32.totalorder %s204, %s220
      %p222 = scmp.eq.s32.totalorder %s28, 0
      %p223 = por %p221, %p222
      %s224 = ssub.s32 %s30, %s37
      %p225 = scmp.eq.s32.totalorder %s224, 0
      %s227 = sadd.s32 %s226, 1
      %s228 = scalar_select %p225, %s226, %s227
      %p231 = pneg %p225
      %p232 = scmp.eq.s32.totalorder %s22, 3
      %p233 = por %p231, %p232
      %p234 = scmp.ne.s32.totalorder %s226, %s229
      %p235 = scmp.eq.s32.totalorder %s22, 0
      %p236 = por %p234, %p235
      %p237 = scmp.ne.s32.totalorder %s226, %s229
      %p238 = scmp.eq.s32.totalorder %s27, 3
      %p239 = por %p237, %p238
      %p240 = scmp.ne.s32.totalorder %s229, %s230
      %p241 = scmp.eq.s32.totalorder %s27, 0
      %p242 = por %p240, %p241
      %p243 = scmp.ne.s32.totalorder %s229, %s230
      %p244 = scmp.eq.s32.totalorder %s28, 3
      %p245 = por %p243, %p244
      %p247 = scmp.ne.s32.totalorder %s230, %s246
      %p248 = scmp.eq.s32.totalorder %s28, 0
      %p249 = por %p247, %p248
      %s250 = ssub.s32 %s30, %s37
      %p251 = scmp.eq.s32.totalorder %s250, 0
      %s253 = sadd.s32 %s252, 1
      %s254 = scalar_select %p251, %s252, %s253
      %p257 = pneg %p251
      %p258 = scmp.eq.s32.totalorder %s22, 3
      %p259 = por %p257, %p258
      %p260 = scmp.ne.s32.totalorder %s252, %s255
      %p261 = scmp.eq.s32.totalorder %s22, 0
      %p262 = por %p260, %p261
      %p263 = scmp.ne.s32.totalorder %s252, %s255
      %p264 = scmp.eq.s32.totalorder %s27, 3
      %p265 = por %p263, %p264
      %p266 = scmp.ne.s32.totalorder %s255, %s256
      %p267 = scmp.eq.s32.totalorder %s27, 0
      %p268 = por %p266, %p267
      %p269 = scmp.ne.s32.totalorder %s255, %s256
      %p270 = scmp.eq.s32.totalorder %s28, 3
      %p271 = por %p269, %p270
      %p273 = scmp.ne.s32.totalorder %s256, %s272
      %p274 = scmp.eq.s32.totalorder %s28, 0
      %p275 = por %p273, %p274
      %s276 = ssub.s32 %s30, %s37
      %p277 = scmp.eq.s32.totalorder %s276, 0
      %s279 = sadd.s32 %s278, 1
      %s280 = scalar_select %p277, %s278, %s279
      %p283 = pneg %p277
      %p284 = scmp.eq.s32.totalorder %s22, 3
      %p285 = por %p283, %p284
      %p286 = scmp.ne.s32.totalorder %s278, %s281
      %p287 = scmp.eq.s32.totalorder %s22, 0
      %p288 = por %p286, %p287
      %p289 = scmp.ne.s32.totalorder %s278, %s281
      %p290 = scmp.eq.s32.totalorder %s27, 3
      %p291 = por %p289, %p290
      %p292 = scmp.ne.s32.totalorder %s281, %s282
      %p293 = scmp.eq.s32.totalorder %s27, 0
      %p294 = por %p292, %p293
      %p295 = scmp.ne.s32.totalorder %s281, %s282
      %p296 = scmp.eq.s32.totalorder %s28, 3
      %p297 = por %p295, %p296
      %p299 = scmp.ne.s32.totalorder %s282, %s298
      %p300 = scmp.eq.s32.totalorder %s28, 0
      %p301 = por %p299, %p300
      %s302 = ssub.s32 %s30, %s37
      %p303 = scmp.eq.s32.totalorder %s302, 0
      %s305 = sadd.s32 %s304, 1
      %s306 = scalar_select %p303, %s304, %s305
      %p309 = pneg %p303
      %p310 = scmp.eq.s32.totalorder %s22, 3
      %p311 = por %p309, %p310
      %p312 = scmp.ne.s32.totalorder %s304, %s307
      %p313 = scmp.eq.s32.totalorder %s22, 0
      %p314 = por %p312, %p313
      %p315 = scmp.ne.s32.totalorder %s304, %s307
      %p316 = scmp.eq.s32.totalorder %s27, 3
      %p317 = por %p315, %p316
      %p318 = scmp.ne.s32.totalorder %s307, %s308
      %p319 = scmp.eq.s32.totalorder %s27, 0
      %p320 = por %p318, %p319
      %p321 = scmp.ne.s32.totalorder %s307, %s308
      %p322 = scmp.eq.s32.totalorder %s28, 3
      %p323 = por %p321, %p322
      %p325 = scmp.ne.s32.totalorder %s308, %s324
      %p326 = scmp.eq.s32.totalorder %s28, 0
      %p327 = por %p325, %p326
      %s328 = ssub.s32 %s30, %s37
      %p329 = scmp.eq.s32.totalorder %s328, 0
      %s331 = sadd.s32 %s330, 1
      %s332 = scalar_select %p329, %s330, %s331
      %p335 = pneg %p329
      %p336 = scmp.eq.s32.totalorder %s22, 3
      %p337 = por %p335, %p336
      %p338 = scmp.ne.s32.totalorder %s330, %s333
      %p339 = scmp.eq.s32.totalorder %s22, 0
      %p340 = por %p338, %p339
      %p341 = scmp.ne.s32.totalorder %s330, %s333
      %p342 = scmp.eq.s32.totalorder %s27, 3
      %p343 = por %p341, %p342
      %p344 = scmp.ne.s32.totalorder %s333, %s334
      %p345 = scmp.eq.s32.totalorder %s27, 0
      %p346 = por %p344, %p345
      %p347 = scmp.ne.s32.totalorder %s333, %s334
      %p348 = scmp.eq.s32.totalorder %s28, 3
      %p349 = por %p347, %p348
      %p351 = scmp.ne.s32.totalorder %s334, %s350
      %p352 = scmp.eq.s32.totalorder %s28, 0
      %p353 = por %p351, %p352
      %s354 = ssub.s32 %s30, %s37
      %p355 = scmp.eq.s32.totalorder %s354, 0
      %s357 = sadd.s32 %s356, 1
      %s358 = scalar_select %p355, %s356, %s357
      %p361 = pneg %p355
      %p362 = scmp.eq.s32.totalorder %s22, 3
      %p363 = por %p361, %p362
      %p364 = scmp.ne.s32.totalorder %s356, %s359
      %p365 = scmp.eq.s32.totalorder %s22, 0
      %p366 = por %p364, %p365
      %p367 = scmp.ne.s32.totalorder %s356, %s359
      %p368 = scmp.eq.s32.totalorder %s27, 3
      %p369 = por %p367, %p368
      %p370 = scmp.ne.s32.totalorder %s359, %s360
      %p371 = scmp.eq.s32.totalorder %s27, 0
      %p372 = por %p370, %p371
      %p373 = scmp.ne.s32.totalorder %s359, %s360
      %p374 = scmp.eq.s32.totalorder %s28, 3
      %p375 = por %p373, %p374
      %p377 = scmp.ne.s32.totalorder %s360, %s376
      %p378 = scmp.eq.s32.totalorder %s28, 0
      %p379 = por %p377, %p378
      %s380 = ssub.s32 %s29, %s41
      %p381 = scmp.eq.s32.totalorder %s380, 0
      %s383 = sadd.s32 %s382, 1
      %s384 = scalar_select %p381, %s382, %s383
      %p387 = pneg %p381
      %p388 = scmp.eq.s32.totalorder %s22, 3
      %p389 = por %p387, %p388
      %p390 = scmp.ne.s32.totalorder %s382, %s385
      %p391 = scmp.eq.s32.totalorder %s22, 0
      %p392 = por %p390, %p391
      %p393 = scmp.ne.s32.totalorder %s382, %s385
      %p394 = scmp.eq.s32.totalorder %s27, 3
      %p395 = por %p393, %p394
      %p396 = scmp.ne.s32.totalorder %s385, %s386
      %p397 = scmp.eq.s32.totalorder %s27, 0
      %p398 = por %p396, %p397
      %p399 = scmp.ne.s32.totalorder %s385, %s386
      %p400 = scmp.eq.s32.totalorder %s28, 3
      %p401 = por %p399, %p400
      %p403 = scmp.ne.s32.totalorder %s386, %s402
      %p404 = scmp.eq.s32.totalorder %s28, 0
      %p405 = por %p403, %p404
      %p406 = scmp.le.s32.totalorder 1, %s22
      %p407 = scmp.lt.s32.totalorder %s22, 5
      %p408 = pnand %p406, %p407
      %p409 = pneg %p408
      // Predicated region
      $region9: #{tpu_custom_call.1} parent=5 // pred_check
        _
      $region10: #{tpu_custom_call.1} parent=5 // pred_check_branch
        %411 = sbr.rel (%p408) target = $region12
      $region11: #{tpu_custom_call.1} parent=5 // pred_region
        %s412 = ssub.s32 %s22, 1
      $region12: #{tpu_custom_call.1} parent=5 // pred_fallthru
        _
      %p413 = scmp.lt.s32.totalorder %s22, 4
      // Predicated region
      $region13: #{tpu_custom_call.1} parent=5 // pred_check
        %p414 = pneg %p413
      $region14: #{tpu_custom_call.1} parent=5 // pred_check_branch
        %416 = sbr.rel (%p414) target = $region16
      $region15: #{tpu_custom_call.1} parent=5 // pred_region
        // Predicated region
        $region17: #{tpu_custom_call.1} parent=15 // pred_check
          %p417 = pneg %p54
        $region18: #{tpu_custom_call.1} parent=15 // pred_check_branch
          %419 = sbr.rel (%p417) target = $region20
        $region19: #{tpu_custom_call.1} parent=15 // pred_region
          %p420 = scmp.lt.s32.totalorder %s29, 1
          %s421 = scalar_select %p420, %s29, 1
          %s422 = smul.addr %s421, 8
          %s423 = scalar_lea.vmem %s0, %s422
        $region20: #{tpu_custom_call.1} parent=15 // pred_fallthru
          _
        // Predicated region
        $region21: #{tpu_custom_call.1} parent=15 // pred_check
          %p424 = pneg %p80
        $region22: #{tpu_custom_call.1} parent=15 // pred_check_branch
          %426 = sbr.rel (%p424) target = $region24
        $region23: #{tpu_custom_call.1} parent=15 // pred_region
          %p427 = scmp.lt.s32.totalorder %s30, 1
          %s428 = scalar_select %p427, %s30, 1
          %s429 = scalar_lea.vmem %s1, %s428
        $region24: #{tpu_custom_call.1} parent=15 // pred_fallthru
          _
        // Predicated region
        $region25: #{tpu_custom_call.1} parent=15 // pred_check
          %p430 = pneg %p106
        $region26: #{tpu_custom_call.1} parent=15 // pred_check_branch
          %432 = sbr.rel (%p430) target = $region28
        $region27: #{tpu_custom_call.1} parent=15 // pred_region
          %p433 = scmp.lt.s32.totalorder %s30, 1
          %s434 = scalar_select %p433, %s30, 1
          %s435 = scalar_lea.vmem %s2, %s434
        $region28: #{tpu_custom_call.1} parent=15 // pred_fallthru
          _
        // Predicated region
        $region29: #{tpu_custom_call.1} parent=15 // pred_check
          %p436 = pneg %p132
        $region30: #{tpu_custom_call.1} parent=15 // pred_check_branch
          %438 = sbr.rel (%p436) target = $region32
        $region31: #{tpu_custom_call.1} parent=15 // pred_region
          %p439 = scmp.lt.s32.totalorder %s30, 1
          %s440 = scalar_select %p439, %s30, 1
          %s441 = smul.addr %s440, 4
          %s442 = smul.addr %s441, 4
          %s443 = scalar_lea.vmem %s3, %s442
        $region32: #{tpu_custom_call.1} parent=15 // pred_fallthru
          _
        // Predicated region
        $region33: #{tpu_custom_call.1} parent=15 // pred_check
          %p444 = pneg %p158
        $region34: #{tpu_custom_call.1} parent=15 // pred_check_branch
          %446 = sbr.rel (%p444) target = $region36
        $region35: #{tpu_custom_call.1} parent=15 // pred_region
          %p447 = scmp.lt.s32.totalorder %s30, 1
          %s448 = scalar_select %p447, %s30, 1
          %s449 = scalar_lea.vmem %s4, %s448
        $region36: #{tpu_custom_call.1} parent=15 // pred_fallthru
          _
        // Predicated region
        $region37: #{tpu_custom_call.1} parent=15 // pred_check
          %p450 = pneg %p184
        $region38: #{tpu_custom_call.1} parent=15 // pred_check_branch
          %452 = sbr.rel (%p450) target = $region40
        $region39: #{tpu_custom_call.1} parent=15 // pred_region
          %p453 = scmp.lt.s32.totalorder %s30, 1
          %s454 = scalar_select %p453, %s30, 1
          %s455 = smul.addr %s454, 4
          %s456 = smul.addr %s455, 4
          %s457 = scalar_lea.vmem %s5, %s456
        $region40: #{tpu_custom_call.1} parent=15 // pred_fallthru
          _
        // Predicated region
        $region41: #{tpu_custom_call.1} parent=15 // pred_check
          %p458 = pneg %p210
        $region42: #{tpu_custom_call.1} parent=15 // pred_check_branch
          %460 = sbr.rel (%p458) target = $region44
        $region43: #{tpu_custom_call.1} parent=15 // pred_region
          %p461 = scmp.lt.s32.totalorder %s30, 1
          %s462 = scalar_select %p461, %s30, 1
          %s463 = scalar_lea.vmem %s6, %s462
        $region44: #{tpu_custom_call.1} parent=15 // pred_fallthru
          _
        // Predicated region
        $region45: #{tpu_custom_call.1} parent=15 // pred_check
          %p464 = pneg %p236
        $region46: #{tpu_custom_call.1} parent=15 // pred_check_branch
          %466 = sbr.rel (%p464) target = $region48
        $region47: #{tpu_custom_call.1} parent=15 // pred_region
          %p467 = scmp.lt.s32.totalorder %s30, 1
          %s468 = scalar_select %p467, %s30, 1
          %s469 = scalar_lea.vmem %s7, %s468
        $region48: #{tpu_custom_call.1} parent=15 // pred_fallthru
          _
        // Predicated region
        $region49: #{tpu_custom_call.1} parent=15 // pred_check
          %p470 = pneg %p262
        $region50: #{tpu_custom_call.1} parent=15 // pred_check_branch
          %472 = sbr.rel (%p470) target = $region52
        $region51: #{tpu_custom_call.1} parent=15 // pred_region
          %p473 = scmp.lt.s32.totalorder %s30, 1
          %s474 = scalar_select %p473, %s30, 1
          %s475 = scalar_lea.vmem %s8, %s474
        $region52: #{tpu_custom_call.1} parent=15 // pred_fallthru
          _
        // Predicated region
        $region53: #{tpu_custom_call.1} parent=15 // pred_check
          %p476 = pneg %p288
        $region54: #{tpu_custom_call.1} parent=15 // pred_check_branch
          %478 = sbr.rel (%p476) target = $region56
        $region55: #{tpu_custom_call.1} parent=15 // pred_region
          %p479 = scmp.lt.s32.totalorder %s30, 1
          %s480 = scalar_select %p479, %s30, 1
          %s481 = smul.addr %s480, 4
          %s482 = smul.addr %s481, 4
          %s483 = scalar_lea.vmem %s9, %s482
        $region56: #{tpu_custom_call.1} parent=15 // pred_fallthru
          _
        // Predicated region
        $region57: #{tpu_custom_call.1} parent=15 // pred_check
          %p484 = pneg %p314
        $region58: #{tpu_custom_call.1} parent=15 // pred_check_branch
          %486 = sbr.rel (%p484) target = $region60
        $region59: #{tpu_custom_call.1} parent=15 // pred_region
          %p487 = scmp.lt.s32.totalorder %s30, 1
          %s488 = scalar_select %p487, %s30, 1
          %s489 = scalar_lea.vmem %s10, %s488
        $region60: #{tpu_custom_call.1} parent=15 // pred_fallthru
          _
        // Predicated region
        $region61: #{tpu_custom_call.1} parent=15 // pred_check
          %p490 = pneg %p340
        $region62: #{tpu_custom_call.1} parent=15 // pred_check_branch
          %492 = sbr.rel (%p490) target = $region64
        $region63: #{tpu_custom_call.1} parent=15 // pred_region
          %p493 = scmp.lt.s32.totalorder %s30, 1
          %s494 = scalar_select %p493, %s30, 1
          %s495 = smul.addr %s494, 16
          %s496 = smul.addr %s495, 4
          %s497 = scalar_lea.vmem %s11, %s496
        $region64: #{tpu_custom_call.1} parent=15 // pred_fallthru
          _
        // Predicated region
        $region65: #{tpu_custom_call.1} parent=15 // pred_check
          %p498 = pneg %p366
        $region66: #{tpu_custom_call.1} parent=15 // pred_check_branch
          %500 = sbr.rel (%p498) target = $region68
        $region67: #{tpu_custom_call.1} parent=15 // pred_region
          %p501 = scmp.lt.s32.totalorder %s30, 1
          %s502 = scalar_select %p501, %s30, 1
          %s503 = scalar_lea.vmem %s12, %s502
        $region68: #{tpu_custom_call.1} parent=15 // pred_fallthru
          _
      $region16: #{tpu_custom_call.1} parent=5 // pred_fallthru
        _
      %p504 = scmp.le.s32.totalorder 1, %s22
      %p505 = scmp.lt.s32.totalorder %s22, 5
      %p506 = pnand %p504, %p505
      %p507 = pneg %p506
      // Predicated region
      $region69: #{tpu_custom_call.1} parent=5 // pred_check
        _
      $region70: #{tpu_custom_call.1} parent=5 // pred_check_branch
        %509 = sbr.rel (%p506) target = $region72
      $region71: #{tpu_custom_call.1} parent=5 // pred_region
        %s510 = ssub.s32 %s22, 1
        %p511 = scmp.lt.s32.totalorder %s31, 1
        %s512 = scalar_select %p511, %s31, 1
        %s513 = smul.addr %s512, 8
        %s514 = scalar_lea.vmem %s0, %s513
        %p515 = pneg %p60
        %p516 = pneg %p57
        %p517 = scmp.lt.s32.totalorder %s32, 1
        %s518 = scalar_select %p517, %s32, 1
        %s519 = scalar_lea.vmem %s1, %s518
        %p520 = pneg %p86
        %p521 = pneg %p83
        %p522 = scmp.lt.s32.totalorder %s32, 1
        %s523 = scalar_select %p522, %s32, 1
        %s524 = scalar_lea.vmem %s2, %s523
        %p525 = pneg %p112
        %p526 = pneg %p109
        %p527 = scmp.lt.s32.totalorder %s32, 1
        %s528 = scalar_select %p527, %s32, 1
        %s529 = smul.addr %s528, 4
        %s530 = smul.addr %s529, 4
        %s531 = scalar_lea.vmem %s3, %s530
        %p532 = pneg %p138
        %p533 = pneg %p135
        %p534 = scmp.lt.s32.totalorder %s32, 1
        %s535 = scalar_select %p534, %s32, 1
        %s536 = scalar_lea.vmem %s4, %s535
        %p537 = pneg %p164
        %p538 = pneg %p161
        %p539 = scmp.lt.s32.totalorder %s32, 1
        %s540 = scalar_select %p539, %s32, 1
        %s541 = smul.addr %s540, 4
        %s542 = smul.addr %s541, 4
        %s543 = scalar_lea.vmem %s5, %s542
        %p544 = pneg %p190
        %p545 = pneg %p187
        %p546 = scmp.lt.s32.totalorder %s32, 1
        %s547 = scalar_select %p546, %s32, 1
        %s548 = scalar_lea.vmem %s6, %s547
        %p549 = pneg %p216
        %p550 = pneg %p213
        %p551 = scmp.lt.s32.totalorder %s32, 1
        %s552 = scalar_select %p551, %s32, 1
        %s553 = scalar_lea.vmem %s7, %s552
        %p554 = pneg %p242
        %p555 = pneg %p239
        %p556 = scmp.lt.s32.totalorder %s32, 1
        %s557 = scalar_select %p556, %s32, 1
        %s558 = scalar_lea.vmem %s8, %s557
        %p559 = pneg %p268
        %p560 = pneg %p265
        %p561 = scmp.lt.s32.totalorder %s32, 1
        %s562 = scalar_select %p561, %s32, 1
        %s563 = smul.addr %s562, 4
        %s564 = smul.addr %s563, 4
        %s565 = scalar_lea.vmem %s9, %s564
        %p566 = pneg %p294
        %p567 = pneg %p291
        %p568 = scmp.lt.s32.totalorder %s32, 1
        %s569 = scalar_select %p568, %s32, 1
        %s570 = scalar_lea.vmem %s10, %s569
        %p571 = pneg %p320
        %p572 = pneg %p317
        %p573 = scmp.lt.s32.totalorder %s32, 1
        %s574 = scalar_select %p573, %s32, 1
        %s575 = smul.addr %s574, 16
        %s576 = smul.addr %s575, 4
        %s577 = scalar_lea.vmem %s11, %s576
        %p578 = pneg %p346
        %p579 = pneg %p343
        %p580 = scmp.lt.s32.totalorder %s32, 1
        %s581 = scalar_select %p580, %s32, 1
        %s582 = scalar_lea.vmem %s12, %s581
        %p583 = pneg %p372
        %p584 = pneg %p369
        %p585 = pneg %p398
        %p586 = pneg %p395
        %s587 = sand.u32 %s385, 1
        %s588 = scalar_lea.sflag [#allocation3], %s587
        %s589 = sand.u32 %s385, 1
        %s590 = smul.addr %s589, 8
        %s591 = scalar_lea.vmem [#allocation2], %s590
        %p592 = scmp.lt.s32.totalorder %s31, 1
        %s593 = scalar_select %p592, %s31, 1
        %s594 = smul.addr %s593, 8
        %s595 = scalar_lea.vmem %s0, %s594
        %p596 = scmp.lt.s32.totalorder %s32, 1
        %s597 = scalar_select %p596, %s32, 1
        %s598 = scalar_lea.vmem %s1, %s597
        %p599 = scmp.lt.s32.totalorder %s32, 1
        %s600 = scalar_select %p599, %s32, 1
        %s601 = scalar_lea.vmem %s2, %s600
        %p602 = scmp.lt.s32.totalorder %s32, 1
        %s603 = scalar_select %p602, %s32, 1
        %s604 = smul.addr %s603, 4
        %s605 = smul.addr %s604, 4
        %s606 = scalar_lea.vmem %s3, %s605
        %p607 = scmp.lt.s32.totalorder %s32, 1
        %s608 = scalar_select %p607, %s32, 1
        %s609 = scalar_lea.vmem %s4, %s608
        %p610 = scmp.lt.s32.totalorder %s32, 1
        %s611 = scalar_select %p610, %s32, 1
        %s612 = smul.addr %s611, 4
        %s613 = smul.addr %s612, 4
        %s614 = scalar_lea.vmem %s5, %s613
        %p615 = scmp.lt.s32.totalorder %s32, 1
        %s616 = scalar_select %p615, %s32, 1
        %s617 = scalar_lea.vmem %s6, %s616
        %p618 = scmp.lt.s32.totalorder %s32, 1
        %s619 = scalar_select %p618, %s32, 1
        %s620 = scalar_lea.vmem %s7, %s619
        %p621 = scmp.lt.s32.totalorder %s32, 1
        %s622 = scalar_select %p621, %s32, 1
        %s623 = scalar_lea.vmem %s8, %s622
        %p624 = scmp.lt.s32.totalorder %s32, 1
        %s625 = scalar_select %p624, %s32, 1
        %s626 = smul.addr %s625, 4
        %s627 = smul.addr %s626, 4
        %s628 = scalar_lea.vmem %s9, %s627
        %p629 = scmp.lt.s32.totalorder %s32, 1
        %s630 = scalar_select %p629, %s32, 1
        %s631 = scalar_lea.vmem %s10, %s630
        %p632 = scmp.lt.s32.totalorder %s32, 1
        %s633 = scalar_select %p632, %s32, 1
        %s634 = smul.addr %s633, 16
        %s635 = smul.addr %s634, 4
        %s636 = scalar_lea.vmem %s11, %s635
        %p637 = scmp.lt.s32.totalorder %s32, 1
        %s638 = scalar_select %p637, %s32, 1
        %s639 = scalar_lea.vmem %s12, %s638
        %p641 = scmp.eq.s32.totalorder %s32, 0
        // Predicated region
        $region73: #{tpu_custom_call.1} parent=71 // pred_check
          %p642 = pneg %p641
        $region74: #{tpu_custom_call.1} parent=71 // pred_check_branch
          %644 = sbr.rel (%p642) target = $region76
        $region75: #{tpu_custom_call.1} parent=71 // pred_region
          %v645 = vld [vmem:[%s595] sm:$0xff]
          %vm646 = vcmask 261120
          %647 = vst.msk [vmem:[%s591] sm:$0xff] %vm646, %v645
        $region76: #{tpu_custom_call.1} parent=71 // pred_fallthru
          _
        %v648 = vld [vmem:[%s591] sm:$0xff]
        %v649 = vld [vmem:[%s598] sm:$0x1]
        %v650 = vld [vmem:[%s601] sm:$0x1]
        %vm651 = vcmask 261120
        %v652 = vsel %vm651, %v648, 0.0
        %653 = vadd.xlane.f32.xlu0 %v652
        %v654 = vpop.xlane.xlu0 %653
        %v655 = vrcp.pop 32.0
        %v656 = vmul.f32 %v654, %v655
        %v657 = vsub.f32 %v648, %v656
        %v658 = vmul.f32 %v657, %v657
        %v659 = vsel %vm651, %v658, 0.0
        %660 = vadd.xlane.f32.xlu0 %v659
        %v661 = vpop.xlane.xlu0 %660
        %v662 = vmul.f32 %v661, %v655
        %v663 = vadd.f32 %v662, 1e-05
        %v664 = vrsqrt.pop %v663
        %v665 = vmul.f32 %v657, %v664
        %v667 = vlaneseq
        %v668 = vshrl.u32 %v667, 7
        %v669 = vsub.s32 0, %v668
        %v670 = vrot.slane %v649, %v669
        %v672 = vmul.f32 %v665, %v670
        %v674 = vlaneseq
        %v675 = vshrl.u32 %v674, 7
        %v676 = vsub.s32 0, %v675
        %v677 = vrot.slane %v650, %v676
        %v679 = vadd.f32 %v672, %v677
        %v680 = vpack.c.bf16 %v679, %v679
        %v681 = vld [vmem:[%s606] sm:$0xf]
        %v682 = vld [vmem:[%s606 + $0x4] sm:$0xf]
        %v683 = vld [vmem:[%s606 + $0x8] sm:$0xf]
        %v684 = vld [vmem:[%s606 + $0xc] sm:$0xf]
        %v685 = vld [vmem:[%s609] sm:$0x1]
        %v687 = vlaneseq
        %v688 = vshrl.u32 %v687, 7
        %v689 = vsub.s32 0, %v688
        %v690 = vrot.slane %v685, %v689
        %v696 = vunpack.c.l.b16 %v681
        %v697 = vunpack.c.l.b16 %v682
        %v698 = vunpack.c.l.b16 %v683
        %v699 = vunpack.c.l.b16 %v684
        %v700 = vpack.c.b16 %v697, %v696
        %v701 = vpack.c.b16 %v699, %v698
        %v705 = vsel %vm651, %v680, 0
        %707 = vmatprep.subr.bf16.mxu0 0
        %708 = vmatpush1.bf16.msra.mxu0 %v700
        %709 = vmatprep.subr.bf16.mxu0 0
        %710 = vmatpush1.bf16.msra.mxu0 %v701
        %711 = vmatprep.subr.bf16.mxu0 0
        %712 = vmatpush1.bf16.msra.mxu0 0
        %713 = vmatprep.subr.bf16.mxu0 0
        %714 = vmatpush1.bf16.msra.mxu0 0
        %715 = vmatprep.subr.bf16.mxu0 0
        %716 = vmatpush1.bf16.msra.mxu0 0
        %717 = vmatprep.subr.bf16.mxu0 0
        %718 = vmatpush1.bf16.msra.mxu0 0
        %719 = vmatprep.subr.bf16.mxu0 0
        %720 = vmatpush1.bf16.msra.mxu0 0
        %721 = vmatprep.subr.bf16.mxu0 0
        %722 = vmatpush1.bf16.msra.mxu0 0
        %723 = vmatprep.subr.bf16.mxu0 0
        %724 = vmatpush1.bf16.msra.mxu0 0
        %725 = vmatprep.subr.bf16.mxu0 0
        %726 = vmatpush1.bf16.msra.mxu0 0
        %727 = vmatprep.subr.bf16.mxu0 0
        %728 = vmatpush1.bf16.msra.mxu0 0
        %729 = vmatprep.subr.bf16.mxu0 0
        %730 = vmatpush1.bf16.msra.mxu0 0
        %731 = vmatprep.subr.bf16.mxu0 0
        %732 = vmatpush1.bf16.msra.mxu0 0
        %733 = vmatprep.subr.bf16.mxu0 0
        %734 = vmatpush1.bf16.msra.mxu0 0
        %735 = vmatprep.subr.bf16.mxu0 0
        %736 = vmatpush1.bf16.msra.mxu0 0
        %737 = vmatprep.subr.bf16.mxu0 0
        %738 = vmatpush1.bf16.msra.mxu0 0
        %739 = vmatprep.mubr.bf16.mxu0 0
        %740 = vmatmul.mubr.bf16.gmra.mrb[0].mxu0 %v705
        %v741 = vpop.f32.mrb[0].mxu0
        %v742 = vadd.f32 %v690, %v741
        %v743 = vpop.f32.mrb[0].mxu0
        %v744 = vpop.f32.mrb[0].mxu0
        %v745 = vpop.f32.mrb[0].mxu0
        %746 = vdwg.mxu0
        %v747 = vpack.c.bf16 %v742, %v742
        %749 = vrot.lane.b32.xlu0 %v747, 120
        %v750 = vpop.permute.xlu0 %749
        %751 = vrot.lane.b32.xlu0 %v747, 112
        %v752 = vpop.permute.xlu0 %751
        %753 = vrot.lane.b32.xlu0 %v747, 104
        %v754 = vpop.permute.xlu0 %753
        %755 = vrot.lane.b32.xlu0 %v747, 96
        %v756 = vpop.permute.xlu0 %755
        %vm757 = vcmask 64512
        %v759 = vsel %vm757, %v747, 0
        %v762 = vsel %vm757, %v756, 0
        %764 = vmatprep.subr.bf16.mxu0 0
        %765 = vmatpush1.bf16.xpose.msra.mxu0 %v762
        %766 = vmatprep.subr.bf16.mxu0 0
        %767 = vmatpush1.bf16.xpose.msra.mxu0 0
        %768 = vmatprep.subr.bf16.mxu0 0
        %769 = vmatpush1.bf16.xpose.msra.mxu0 0
        %770 = vmatprep.subr.bf16.mxu0 0
        %771 = vmatpush1.bf16.xpose.msra.mxu0 0
        %772 = vmatprep.subr.bf16.mxu0 0
        %773 = vmatpush1.bf16.xpose.msra.mxu0 0
        %774 = vmatprep.subr.bf16.mxu0 0
        %775 = vmatpush1.bf16.xpose.msra.mxu0 0
        %776 = vmatprep.subr.bf16.mxu0 0
        %777 = vmatpush1.bf16.xpose.msra.mxu0 0
        %778 = vmatprep.subr.bf16.mxu0 0
        %779 = vmatpush1.bf16.xpose.msra.mxu0 0
        %780 = vmatprep.subr.bf16.mxu0 0
        %781 = vmatpush1.bf16.xpose.msra.mxu0 0
        %782 = vmatprep.subr.bf16.mxu0 0
        %783 = vmatpush1.bf16.xpose.msra.mxu0 0
        %784 = vmatprep.subr.bf16.mxu0 0
        %785 = vmatpush1.bf16.xpose.msra.mxu0 0
        %786 = vmatprep.subr.bf16.mxu0 0
        %787 = vmatpush1.bf16.xpose.msra.mxu0 0
        %788 = vmatprep.subr.bf16.mxu0 0
        %789 = vmatpush1.bf16.xpose.msra.mxu0 0
        %790 = vmatprep.subr.bf16.mxu0 0
        %791 = vmatpush1.bf16.xpose.msra.mxu0 0
        %792 = vmatprep.subr.bf16.mxu0 0
        %793 = vmatpush1.bf16.xpose.msra.mxu0 0
        %794 = vmatprep.subr.bf16.mxu0 0
        %795 = vmatpush1.bf16.xpose.msra.mxu0 0
        %796 = vmatprep.mubr.bf16.mxu0 0
        %797 = vmatmul.mubr.bf16.gmra.mrb[0].mxu0 %v759
        %v798 = vpop.f32.mrb[0].mxu0
        %v799 = vadd.f32 0.0, %v798
        %v800 = vpop.f32.mrb[0].mxu0
        %v801 = vpop.f32.mrb[0].mxu0
        %v802 = vpop.f32.mrb[0].mxu0
        %803 = vdwg.mxu0
        %804 = vrot.lane.b32.xlu0 %v750, 96
        %v805 = vpop.permute.xlu0 %804
        %v807 = vsel %vm757, %v750, 0
        %v810 = vsel %vm757, %v805, 0
        %812 = vmatprep.subr.bf16.mxu0 0
        %813 = vmatpush1.bf16.xpose.msra.mxu0 %v810
        %814 = vmatprep.subr.bf16.mxu0 0
        %815 = vmatpush1.bf16.xpose.msra.mxu0 0
        %816 = vmatprep.subr.bf16.mxu0 0
        %817 = vmatpush1.bf16.xpose.msra.mxu0 0
        %818 = vmatprep.subr.bf16.mxu0 0
        %819 = vmatpush1.bf16.xpose.msra.mxu0 0
        %820 = vmatprep.subr.bf16.mxu0 0
        %821 = vmatpush1.bf16.xpose.msra.mxu0 0
        %822 = vmatprep.subr.bf16.mxu0 0
        %823 = vmatpush1.bf16.xpose.msra.mxu0 0
        %824 = vmatprep.subr.bf16.mxu0 0
        %825 = vmatpush1.bf16.xpose.msra.mxu0 0
        %826 = vmatprep.subr.bf16.mxu0 0
        %827 = vmatpush1.bf16.xpose.msra.mxu0 0
        %828 = vmatprep.subr.bf16.mxu0 0
        %829 = vmatpush1.bf16.xpose.msra.mxu0 0
        %830 = vmatprep.subr.bf16.mxu0 0
        %831 = vmatpush1.bf16.xpose.msra.mxu0 0
        %832 = vmatprep.subr.bf16.mxu0 0
        %833 = vmatpush1.bf16.xpose.msra.mxu0 0
        %834 = vmatprep.subr.bf16.mxu0 0
        %835 = vmatpush1.bf16.xpose.msra.mxu0 0
        %836 = vmatprep.subr.bf16.mxu0 0
        %837 = vmatpush1.bf16.xpose.msra.mxu0 0
        %838 = vmatprep.subr.bf16.mxu0 0
        %839 = vmatpush1.bf16.xpose.msra.mxu0 0
        %840 = vmatprep.subr.bf16.mxu0 0
        %841 = vmatpush1.bf16.xpose.msra.mxu0 0
        %842 = vmatprep.subr.bf16.mxu0 0
        %843 = vmatpush1.bf16.xpose.msra.mxu0 0
        %844 = vmatprep.mubr.bf16.mxu0 0
        %845 = vmatmul.mubr.bf16.gmra.mrb[0].mxu0 %v807
        %v846 = vpop.f32.mrb[0].mxu0
        %v847 = vadd.f32 0.0, %v846
        %v848 = vpop.f32.mrb[0].mxu0
        %v849 = vpop.f32.mrb[0].mxu0
        %v850 = vpop.f32.mrb[0].mxu0
        %851 = vdwg.mxu0
        %852 = vrot.lane.b32.xlu0 %v752, 96
        %v853 = vpop.permute.xlu0 %852
        %v855 = vsel %vm757, %v752, 0
        %v858 = vsel %vm757, %v853, 0
        %860 = vmatprep.subr.bf16.mxu0 0
        %861 = vmatpush1.bf16.xpose.msra.mxu0 %v858
        %862 = vmatprep.subr.bf16.mxu0 0
        %863 = vmatpush1.bf16.xpose.msra.mxu0 0
        %864 = vmatprep.subr.bf16.mxu0 0
        %865 = vmatpush1.bf16.xpose.msra.mxu0 0
        %866 = vmatprep.subr.bf16.mxu0 0
        %867 = vmatpush1.bf16.xpose.msra.mxu0 0
        %868 = vmatprep.subr.bf16.mxu0 0
        %869 = vmatpush1.bf16.xpose.msra.mxu0 0
        %870 = vmatprep.subr.bf16.mxu0 0
        %871 = vmatpush1.bf16.xpose.msra.mxu0 0
        %872 = vmatprep.subr.bf16.mxu0 0
        %873 = vmatpush1.bf16.xpose.msra.mxu0 0
        %874 = vmatprep.subr.bf16.mxu0 0
        %875 = vmatpush1.bf16.xpose.msra.mxu0 0
        %876 = vmatprep.subr.bf16.mxu0 0
        %877 = vmatpush1.bf16.xpose.msra.mxu0 0
        %878 = vmatprep.subr.bf16.mxu0 0
        %879 = vmatpush1.bf16.xpose.msra.mxu0 0
        %880 = vmatprep.subr.bf16.mxu0 0
        %881 = vmatpush1.bf16.xpose.msra.mxu0 0
        %882 = vmatprep.subr.bf16.mxu0 0
        %883 = vmatpush1.bf16.xpose.msra.mxu0 0
        %884 = vmatprep.subr.bf16.mxu0 0
        %885 = vmatpush1.bf16.xpose.msra.mxu0 0
        %886 = vmatprep.subr.bf16.mxu0 0
        %887 = vmatpush1.bf16.xpose.msra.mxu0 0
        %888 = vmatprep.subr.bf16.mxu0 0
        %889 = vmatpush1.bf16.xpose.msra.mxu0 0
        %890 = vmatprep.subr.bf16.mxu0 0
        %891 = vmatpush1.bf16.xpose.msra.mxu0 0
        %892 = vmatprep.mubr.bf16.mxu0 0
        %893 = vmatmul.mubr.bf16.gmra.mrb[0].mxu0 %v855
        %v894 = vpop.f32.mrb[0].mxu0
        %v895 = vadd.f32 0.0, %v894
        %v896 = vpop.f32.mrb[0].mxu0
        %v897 = vpop.f32.mrb[0].mxu0
        %v898 = vpop.f32.mrb[0].mxu0
        %899 = vdwg.mxu0
        %900 = vrot.lane.b32.xlu0 %v754, 96
        %v901 = vpop.permute.xlu0 %900
        %v903 = vsel %vm757, %v754, 0
        %v906 = vsel %vm757, %v901, 0
        %908 = vmatprep.subr.bf16.mxu0 0
        %909 = vmatpush1.bf16.xpose.msra.mxu0 %v906
        %910 = vmatprep.subr.bf16.mxu0 0
        %911 = vmatpush1.bf16.xpose.msra.mxu0 0
        %912 = vmatprep.subr.bf16.mxu0 0
        %913 = vmatpush1.bf16.xpose.msra.mxu0 0
        %914 = vmatprep.subr.bf16.mxu0 0
        %915 = vmatpush1.bf16.xpose.msra.mxu0 0
        %916 = vmatprep.subr.bf16.mxu0 0
        %917 = vmatpush1.bf16.xpose.msra.mxu0 0
        %918 = vmatprep.subr.bf16.mxu0 0
        %919 = vmatpush1.bf16.xpose.msra.mxu0 0
        %920 = vmatprep.subr.bf16.mxu0 0
        %921 = vmatpush1.bf16.xpose.msra.mxu0 0
        %922 = vmatprep.subr.bf16.mxu0 0
        %923 = vmatpush1.bf16.xpose.msra.mxu0 0
        %924 = vmatprep.subr.bf16.mxu0 0
        %925 = vmatpush1.bf16.xpose.msra.mxu0 0
        %926 = vmatprep.subr.bf16.mxu0 0
        %927 = vmatpush1.bf16.xpose.msra.mxu0 0
        %928 = vmatprep.subr.bf16.mxu0 0
        %929 = vmatpush1.bf16.xpose.msra.mxu0 0
        %930 = vmatprep.subr.bf16.mxu0 0
        %931 = vmatpush1.bf16.xpose.msra.mxu0 0
        %932 = vmatprep.subr.bf16.mxu0 0
        %933 = vmatpush1.bf16.xpose.msra.mxu0 0
        %934 = vmatprep.subr.bf16.mxu0 0
        %935 = vmatpush1.bf16.xpose.msra.mxu0 0
        %936 = vmatprep.subr.bf16.mxu0 0
        %937 = vmatpush1.bf16.xpose.msra.mxu0 0
        %938 = vmatprep.subr.bf16.mxu0 0
        %939 = vmatpush1.bf16.xpose.msra.mxu0 0
        %940 = vmatprep.mubr.bf16.mxu0 0
        %941 = vmatmul.mubr.bf16.gmra.mrb[0].mxu0 %v903
        %v942 = vpop.f32.mrb[0].mxu0
        %v943 = vadd.f32 0.0, %v942
        %v944 = vpop.f32.mrb[0].mxu0
        %v945 = vpop.f32.mrb[0].mxu0
        %v946 = vpop.f32.mrb[0].mxu0
        %947 = vdwg.mxu0
        %v948 = vsel %vm757, %v799, -inf
        %949 = vmax.xlane.f32.xlu0 %v948
        %v950 = vpop.xlane.xlu0 %949
        %v951 = vsel %vm757, %v847, -inf
        %952 = vmax.xlane.f32.xlu0 %v951
        %v953 = vpop.xlane.xlu0 %952
        %v954 = vsel %vm757, %v895, -inf
        %955 = vmax.xlane.f32.xlu0 %v954
        %v956 = vpop.xlane.xlu0 %955
        %v957 = vsel %vm757, %v943, -inf
        %958 = vmax.xlane.f32.xlu0 %v957
        %v959 = vpop.xlane.xlu0 %958
        %v960 = vsub.f32 %v799, %v950
        %v961 = vsub.f32 %v847, %v953
        %v962 = vsub.f32 %v895, %v956
        %v963 = vsub.f32 %v943, %v959
        %v964 = vmul.f32 %v960, 1.442695
        %v965 = vpow.pop %v964
        %v966 = vmul.f32 %v961, 1.442695
        %v967 = vpow.pop %v966
        %v968 = vmul.f32 %v962, 1.442695
        %v969 = vpow.pop %v968
        %v970 = vmul.f32 %v963, 1.442695
        %v971 = vpow.pop %v970
        %v972 = vsel %vm757, %v965, 0.0
        %973 = vadd.xlane.f32.xlu0 %v972
        %v974 = vpop.xlane.xlu0 %973
        %v975 = vsel %vm757, %v967, 0.0
        %976 = vadd.xlane.f32.xlu0 %v975
        %v977 = vpop.xlane.xlu0 %976
        %v978 = vsel %vm757, %v969, 0.0
        %979 = vadd.xlane.f32.xlu0 %v978
        %v980 = vpop.xlane.xlu0 %979
        %v981 = vsel %vm757, %v971, 0.0
        %982 = vadd.xlane.f32.xlu0 %v981
        %v983 = vpop.xlane.xlu0 %982
        %v984 = vrcp.pop %v974
        %v985 = vrcp.pop %v977
        %v986 = vrcp.pop %v980
        %v987 = vrcp.pop %v983
        %v988 = vmul.f32 %v965, %v984
        %v989 = vmul.f32 %v967, %v985
        %v990 = vmul.f32 %v969, %v986
        %v991 = vmul.f32 %v971, %v987
        %v992 = vpack.c.bf16 %v988, %v988
        %v993 = vpack.c.bf16 %v989, %v989
        %v994 = vpack.c.bf16 %v990, %v990
        %v995 = vpack.c.bf16 %v991, %v991
        %996 = vrot.lane.b32.xlu0 %v747, 64
        %v997 = vpop.permute.xlu0 %996
        %v999 = vsel %vm757, %v992, 0
        %vm1001 = vcmask 1043456
        %v1003 = vsel %vm1001, %v997, 0
        %1005 = vmatprep.subr.bf16.mxu0 0
        %1006 = vmatpush1.bf16.msra.mxu0 %v1003
        %1007 = vmatprep.subr.bf16.mxu0 0
        %1008 = vmatpush1.bf16.msra.mxu0 0
        %1009 = vmatprep.subr.bf16.mxu0 0
        %1010 = vmatpush1.bf16.msra.mxu0 0
        %1011 = vmatprep.subr.bf16.mxu0 0
        %1012 = vmatpush1.bf16.msra.mxu0 0
        %1013 = vmatprep.subr.bf16.mxu0 0
        %1014 = vmatpush1.bf16.msra.mxu0 0
        %1015 = vmatprep.subr.bf16.mxu0 0
        %1016 = vmatpush1.bf16.msra.mxu0 0
        %1017 = vmatprep.subr.bf16.mxu0 0
        %1018 = vmatpush1.bf16.msra.mxu0 0
        %1019 = vmatprep.subr.bf16.mxu0 0
        %1020 = vmatpush1.bf16.msra.mxu0 0
        %1021 = vmatprep.subr.bf16.mxu0 0
        %1022 = vmatpush1.bf16.msra.mxu0 0
        %1023 = vmatprep.subr.bf16.mxu0 0
        %1024 = vmatpush1.bf16.msra.mxu0 0
        %1025 = vmatprep.subr.bf16.mxu0 0
        %1026 = vmatpush1.bf16.msra.mxu0 0
        %1027 = vmatprep.subr.bf16.mxu0 0
        %1028 = vmatpush1.bf16.msra.mxu0 0
        %1029 = vmatprep.subr.bf16.mxu0 0
        %1030 = vmatpush1.bf16.msra.mxu0 0
        %1031 = vmatprep.subr.bf16.mxu0 0
        %1032 = vmatpush1.bf16.msra.mxu0 0
        %1033 = vmatprep.subr.bf16.mxu0 0
        %1034 = vmatpush1.bf16.msra.mxu0 0
        %1035 = vmatprep.subr.bf16.mxu0 0
        %1036 = vmatpush1.bf16.msra.mxu0 0
        %1037 = vmatprep.mubr.bf16.mxu0 0
        %1038 = vmatmul.mubr.bf16.gmra.mrb[0].mxu0 %v999
        %v1039 = vpop.f32.mrb[0].mxu0
        %v1040 = vadd.f32 0.0, %v1039
        %v1041 = vpop.f32.mrb[0].mxu0
        %v1042 = vpop.f32.mrb[0].mxu0
        %v1043 = vpop.f32.mrb[0].mxu0
        %1044 = vdwg.mxu0
        %1045 = vrot.lane.b32.xlu0 %v750, 64
        %v1046 = vpop.permute.xlu0 %1045
        %v1048 = vsel %vm757, %v993, 0
        %v1051 = vsel %vm1001, %v1046, 0
        %1053 = vmatprep.subr.bf16.mxu0 0
        %1054 = vmatpush1.bf16.msra.mxu0 %v1051
        %1055 = vmatprep.subr.bf16.mxu0 0
        %1056 = vmatpush1.bf16.msra.mxu0 0
        %1057 = vmatprep.subr.bf16.mxu0 0
        %1058 = vmatpush1.bf16.msra.mxu0 0
        %1059 = vmatprep.subr.bf16.mxu0 0
        %1060 = vmatpush1.bf16.msra.mxu0 0
        %1061 = vmatprep.subr.bf16.mxu0 0
        %1062 = vmatpush1.bf16.msra.mxu0 0
        %1063 = vmatprep.subr.bf16.mxu0 0
        %1064 = vmatpush1.bf16.msra.mxu0 0
        %1065 = vmatprep.subr.bf16.mxu0 0
        %1066 = vmatpush1.bf16.msra.mxu0 0
        %1067 = vmatprep.subr.bf16.mxu0 0
        %1068 = vmatpush1.bf16.msra.mxu0 0
        %1069 = vmatprep.subr.bf16.mxu0 0
        %1070 = vmatpush1.bf16.msra.mxu0 0
        %1071 = vmatprep.subr.bf16.mxu0 0
        %1072 = vmatpush1.bf16.msra.mxu0 0
        %1073 = vmatprep.subr.bf16.mxu0 0
        %1074 = vmatpush1.bf16.msra.mxu0 0
        %1075 = vmatprep.subr.bf16.mxu0 0
        %1076 = vmatpush1.bf16.msra.mxu0 0
        %1077 = vmatprep.subr.bf16.mxu0 0
        %1078 = vmatpush1.bf16.msra.mxu0 0
        %1079 = vmatprep.subr.bf16.mxu0 0
        %1080 = vmatpush1.bf16.msra.mxu0 0
        %1081 = vmatprep.subr.bf16.mxu0 0
        %1082 = vmatpush1.bf16.msra.mxu0 0
        %1083 = vmatprep.subr.bf16.mxu0 0
        %1084 = vmatpush1.bf16.msra.mxu0 0
        %1085 = vmatprep.mubr.bf16.mxu0 0
        %1086 = vmatmul.mubr.bf16.gmra.mrb[0].mxu0 %v1048
        %v1087 = vpop.f32.mrb[0].mxu0
        %v1088 = vadd.f32 0.0, %v1087
        %v1089 = vpop.f32.mrb[0].mxu0
        %v1090 = vpop.f32.mrb[0].mxu0
        %v1091 = vpop.f32.mrb[0].mxu0
        %1092 = vdwg.mxu0
        %1093 = vrot.lane.b32.xlu0 %v752, 64
        %v1094 = vpop.permute.xlu0 %1093
        %v1096 = vsel %vm757, %v994, 0
        %v1099 = vsel %vm1001, %v1094, 0
        %1101 = vmatprep.subr.bf16.mxu0 0
        %1102 = vmatpush1.bf16.msra.mxu0 %v1099
        %1103 = vmatprep.subr.bf16.mxu0 0
        %1104 = vmatpush1.bf16.msra.mxu0 0
        %1105 = vmatprep.subr.bf16.mxu0 0
        %1106 = vmatpush1.bf16.msra.mxu0 0
        %1107 = vmatprep.subr.bf16.mxu0 0
        %1108 = vmatpush1.bf16.msra.mxu0 0
        %1109 = vmatprep.subr.bf16.mxu0 0
        %1110 = vmatpush1.bf16.msra.mxu0 0
        %1111 = vmatprep.subr.bf16.mxu0 0
        %1112 = vmatpush1.bf16.msra.mxu0 0
        %1113 = vmatprep.subr.bf16.mxu0 0
        %1114 = vmatpush1.bf16.msra.mxu0 0
        %1115 = vmatprep.subr.bf16.mxu0 0
        %1116 = vmatpush1.bf16.msra.mxu0 0
        %1117 = vmatprep.subr.bf16.mxu0 0
        %1118 = vmatpush1.bf16.msra.mxu0 0
        %1119 = vmatprep.subr.bf16.mxu0 0
        %1120 = vmatpush1.bf16.msra.mxu0 0
        %1121 = vmatprep.subr.bf16.mxu0 0
        %1122 = vmatpush1.bf16.msra.mxu0 0
        %1123 = vmatprep.subr.bf16.mxu0 0
        %1124 = vmatpush1.bf16.msra.mxu0 0
        %1125 = vmatprep.subr.bf16.mxu0 0
        %1126 = vmatpush1.bf16.msra.mxu0 0
        %1127 = vmatprep.subr.bf16.mxu0 0
        %1128 = vmatpush1.bf16.msra.mxu0 0
        %1129 = vmatprep.subr.bf16.mxu0 0
        %1130 = vmatpush1.bf16.msra.mxu0 0
        %1131 = vmatprep.subr.bf16.mxu0 0
        %1132 = vmatpush1.bf16.msra.mxu0 0
        %1133 = vmatprep.mubr.bf16.mxu0 0
        %1134 = vmatmul.mubr.bf16.gmra.mrb[0].mxu0 %v1096
        %v1135 = vpop.f32.mrb[0].mxu0
        %v1136 = vadd.f32 0.0, %v1135
        %v1137 = vpop.f32.mrb[0].mxu0
        %v1138 = vpop.f32.mrb[0].mxu0
        %v1139 = vpop.f32.mrb[0].mxu0
        %1140 = vdwg.mxu0
        %1141 = vrot.lane.b32.xlu0 %v754, 64
        %v1142 = vpop.permute.xlu0 %1141
        %v1144 = vsel %vm757, %v995, 0
        %v1147 = vsel %vm1001, %v1142, 0
        %1149 = vmatprep.subr.bf16.mxu0 0
        %1150 = vmatpush1.bf16.msra.mxu0 %v1147
        %1151 = vmatprep.subr.bf16.mxu0 0
        %1152 = vmatpush1.bf16.msra.mxu0 0
        %1153 = vmatprep.subr.bf16.mxu0 0
        %1154 = vmatpush1.bf16.msra.mxu0 0
        %1155 = vmatprep.subr.bf16.mxu0 0
        %1156 = vmatpush1.bf16.msra.mxu0 0
        %1157 = vmatprep.subr.bf16.mxu0 0
        %1158 = vmatpush1.bf16.msra.mxu0 0
        %1159 = vmatprep.subr.bf16.mxu0 0
        %1160 = vmatpush1.bf16.msra.mxu0 0
        %1161 = vmatprep.subr.bf16.mxu0 0
        %1162 = vmatpush1.bf16.msra.mxu0 0
        %1163 = vmatprep.subr.bf16.mxu0 0
        %1164 = vmatpush1.bf16.msra.mxu0 0
        %1165 = vmatprep.subr.bf16.mxu0 0
        %1166 = vmatpush1.bf16.msra.mxu0 0
        %1167 = vmatprep.subr.bf16.mxu0 0
        %1168 = vmatpush1.bf16.msra.mxu0 0
        %1169 = vmatprep.subr.bf16.mxu0 0
        %1170 = vmatpush1.bf16.msra.mxu0 0
        %1171 = vmatprep.subr.bf16.mxu0 0
        %1172 = vmatpush1.bf16.msra.mxu0 0
        %1173 = vmatprep.subr.bf16.mxu0 0
        %1174 = vmatpush1.bf16.msra.mxu0 0
        %1175 = vmatprep.subr.bf16.mxu0 0
        %1176 = vmatpush1.bf16.msra.mxu0 0
        %1177 = vmatprep.subr.bf16.mxu0 0
        %1178 = vmatpush1.bf16.msra.mxu0 0
        %1179 = vmatprep.subr.bf16.mxu0 0
        %1180 = vmatpush1.bf16.msra.mxu0 0
        %1181 = vmatprep.mubr.bf16.mxu0 0
        %1182 = vmatmul.mubr.bf16.gmra.mrb[0].mxu0 %v1144
        %v1183 = vpop.f32.mrb[0].mxu0
        %v1184 = vadd.f32 0.0, %v1183
        %v1185 = vpop.f32.mrb[0].mxu0
        %v1186 = vpop.f32.mrb[0].mxu0
        %v1187 = vpop.f32.mrb[0].mxu0
        %1188 = vdwg.mxu0
        %v1189 = vpack.c.bf16 %v1040, %v1040
        %v1190 = vpack.c.bf16 %v1088, %v1088
        %v1191 = vpack.c.bf16 %v1136, %v1136
        %v1192 = vpack.c.bf16 %v1184, %v1184
        %1194 = vrot.lane.b32.xlu0 %v1190, 8
        %v1195 = vpop.permute.xlu0 %1194
        %1197 = vrot.lane.b32.xlu0 %v1191, 16
        %v1198 = vpop.permute.xlu0 %1197
        %1200 = vrot.lane.b32.xlu0 %v1192, 24
        %v1201 = vpop.permute.xlu0 %1200
        %v1204 = vsel %vm757, %v1189, %v1195
        %vm1205 = vcmask 130048
        %v1207 = vsel %vm1205, %v1204, %v1198
        %vm1208 = vcmask 195584
        %v1210 = vsel %vm1208, %v1207, %v1201
        %v1211 = vld [vmem:[%s614] sm:$0xf]
        %v1212 = vld [vmem:[%s614 + $0x4] sm:$0xf]
        %v1213 = vld [vmem:[%s614 + $0x8] sm:$0xf]
        %v1214 = vld [vmem:[%s614 + $0xc] sm:$0xf]
        %v1215 = vld [vmem:[%s617] sm:$0x1]
        %v1217 = vlaneseq
        %v1218 = vshrl.u32 %v1217, 7
        %v1219 = vsub.s32 0, %v1218
        %v1220 = vrot.slane %v1215, %v1219
        %v1226 = vunpack.c.l.b16 %v1211
        %v1227 = vunpack.c.l.b16 %v1212
        %v1228 = vunpack.c.l.b16 %v1213
        %v1229 = vunpack.c.l.b16 %v1214
        %v1230 = vpack.c.b16 %v1227, %v1226
        %v1231 = vpack.c.b16 %v1229, %v1228
        %v1234 = vsel %vm651, %v1210, 0
        %1236 = vmatprep.subr.bf16.mxu0 0
        %1237 = vmatpush1.bf16.msra.mxu0 %v1230
        %1238 = vmatprep.subr.bf16.mxu0 0
        %1239 = vmatpush1.bf16.msra.mxu0 %v1231
        %1240 = vmatprep.subr.bf16.mxu0 0
        %1241 = vmatpush1.bf16.msra.mxu0 0
        %1242 = vmatprep.subr.bf16.mxu0 0
        %1243 = vmatpush1.bf16.msra.mxu0 0
        %1244 = vmatprep.subr.bf16.mxu0 0
        %1245 = vmatpush1.bf16.msra.mxu0 0
        %1246 = vmatprep.subr.bf16.mxu0 0
        %1247 = vmatpush1.bf16.msra.mxu0 0
        %1248 = vmatprep.subr.bf16.mxu0 0
        %1249 = vmatpush1.bf16.msra.mxu0 0
        %1250 = vmatprep.subr.bf16.mxu0 0
        %1251 = vmatpush1.bf16.msra.mxu0 0
        %1252 = vmatprep.subr.bf16.mxu0 0
        %1253 = vmatpush1.bf16.msra.mxu0 0
        %1254 = vmatprep.subr.bf16.mxu0 0
        %1255 = vmatpush1.bf16.msra.mxu0 0
        %1256 = vmatprep.subr.bf16.mxu0 0
        %1257 = vmatpush1.bf16.msra.mxu0 0
        %1258 = vmatprep.subr.bf16.mxu0 0
        %1259 = vmatpush1.bf16.msra.mxu0 0
        %1260 = vmatprep.subr.bf16.mxu0 0
        %1261 = vmatpush1.bf16.msra.mxu0 0
        %1262 = vmatprep.subr.bf16.mxu0 0
        %1263 = vmatpush1.bf16.msra.mxu0 0
        %1264 = vmatprep.subr.bf16.mxu0 0
        %1265 = vmatpush1.bf16.msra.mxu0 0
        %1266 = vmatprep.subr.bf16.mxu0 0
        %1267 = vmatpush1.bf16.msra.mxu0 0
        %1268 = vmatprep.mubr.bf16.mxu0 0
        %1269 = vmatmul.mubr.bf16.gmra.mrb[0].mxu0 %v1234
        %v1270 = vpop.f32.mrb[0].mxu0
        %v1271 = vadd.f32 %v1220, %v1270
        %v1272 = vpop.f32.mrb[0].mxu0
        %v1273 = vpop.f32.mrb[0].mxu0
        %v1274 = vpop.f32.mrb[0].mxu0
        %1275 = vdwg.mxu0
        %v1276 = vadd.f32 %v648, %v1271
        %v1277 = vld [vmem:[%s620] sm:$0x1]
        %v1278 = vld [vmem:[%s623] sm:$0x1]
        %v1279 = vsel %vm651, %v1276, 0.0
        %1280 = vadd.xlane.f32.xlu0 %v1279
        %v1281 = vpop.xlane.xlu0 %1280
        %v1282 = vmul.f32 %v1281, %v655
        %v1283 = vsub.f32 %v1276, %v1282
        %v1284 = vmul.f32 %v1283, %v1283
        %v1285 = vsel %vm651, %v1284, 0.0
        %1286 = vadd.xlane.f32.xlu0 %v1285
        %v1287 = vpop.xlane.xlu0 %1286
        %v1288 = vmul.f32 %v1287, %v655
        %v1289 = vadd.f32 %v1288, 1e-05
        %v1290 = vrsqrt.pop %v1289
        %v1291 = vmul.f32 %v1283, %v1290
        %v1293 = vlaneseq
        %v1294 = vshrl.u32 %v1293, 7
        %v1295 = vsub.s32 0, %v1294
        %v1296 = vrot.slane %v1277, %v1295
        %v1298 = vmul.f32 %v1291, %v1296
        %v1300 = vlaneseq
        %v1301 = vshrl.u32 %v1300, 7
        %v1302 = vsub.s32 0, %v1301
        %v1303 = vrot.slane %v1278, %v1302
        %v1305 = vadd.f32 %v1298, %v1303
        %v1306 = vpack.c.bf16 %v1305, %v1305
        %v1307 = vld [vmem:[%s628] sm:$0xf]
        %v1308 = vld [vmem:[%s628 + $0x4] sm:$0xf]
        %v1309 = vld [vmem:[%s628 + $0x8] sm:$0xf]
        %v1310 = vld [vmem:[%s628 + $0xc] sm:$0xf]
        %v1311 = vld [vmem:[%s631] sm:$0x1]
        %v1313 = vlaneseq
        %v1314 = vshrl.u32 %v1313, 7
        %v1315 = vsub.s32 0, %v1314
        %v1316 = vrot.slane %v1311, %v1315
        %v1322 = vunpack.c.l.b16 %v1307
        %v1323 = vunpack.c.l.b16 %v1308
        %v1324 = vunpack.c.l.b16 %v1309
        %v1325 = vunpack.c.l.b16 %v1310
        %v1326 = vpack.c.b16 %v1323, %v1322
        %v1327 = vpack.c.b16 %v1325, %v1324
        %v1331 = vsel %vm651, %v1306, 0
        %1333 = vmatprep.subr.bf16.mxu0 0
        %1334 = vmatpush1.bf16.msra.mxu0 %v1326
        %1335 = vmatprep.subr.bf16.mxu0 0
        %1336 = vmatpush1.bf16.msra.mxu0 %v1327
        %1337 = vmatprep.subr.bf16.mxu0 0
        %1338 = vmatpush1.bf16.msra.mxu0 0
        %1339 = vmatprep.subr.bf16.mxu0 0
        %1340 = vmatpush1.bf16.msra.mxu0 0
        %1341 = vmatprep.subr.bf16.mxu0 0
        %1342 = vmatpush1.bf16.msra.mxu0 0
        %1343 = vmatprep.subr.bf16.mxu0 0
        %1344 = vmatpush1.bf16.msra.mxu0 0
        %1345 = vmatprep.subr.bf16.mxu0 0
        %1346 = vmatpush1.bf16.msra.mxu0 0
        %1347 = vmatprep.subr.bf16.mxu0 0
        %1348 = vmatpush1.bf16.msra.mxu0 0
        %1349 = vmatprep.subr.bf16.mxu0 0
        %1350 = vmatpush1.bf16.msra.mxu0 0
        %1351 = vmatprep.subr.bf16.mxu0 0
        %1352 = vmatpush1.bf16.msra.mxu0 0
        %1353 = vmatprep.subr.bf16.mxu0 0
        %1354 = vmatpush1.bf16.msra.mxu0 0
        %1355 = vmatprep.subr.bf16.mxu0 0
        %1356 = vmatpush1.bf16.msra.mxu0 0
        %1357 = vmatprep.subr.bf16.mxu0 0
        %1358 = vmatpush1.bf16.msra.mxu0 0
        %1359 = vmatprep.subr.bf16.mxu0 0
        %1360 = vmatpush1.bf16.msra.mxu0 0
        %1361 = vmatprep.subr.bf16.mxu0 0
        %1362 = vmatpush1.bf16.msra.mxu0 0
        %1363 = vmatprep.subr.bf16.mxu0 0
        %1364 = vmatpush1.bf16.msra.mxu0 0
        %1365 = vmatprep.mubr.bf16.mxu0 0
        %1366 = vmatmul.mubr.bf16.gmra.mrb[0].mxu0 %v1331
        %v1367 = vpop.f32.mrb[0].mxu0
        %v1368 = vadd.f32 %v1316, %v1367
        %v1369 = vpop.f32.mrb[0].mxu0
        %v1370 = vpop.f32.mrb[0].mxu0
        %v1371 = vpop.f32.mrb[0].mxu0
        %1372 = vdwg.mxu0
        %v1373 = vmul.f32 %v1368, 1.702
        %v1374 = vxor.u32 %v1373, 2147483648
        %v1375 = vmul.f32 %v1374, 1.442695
        %v1376 = vpow.pop %v1375
        %v1377 = vadd.f32 %v1376, 1.0
        %v1378 = vrcp.pop %v1377
        %v1379 = vmul.f32 1.0, %v1378
        %v1380 = vmul.f32 %v1368, %v1379
        %v1381 = vpack.c.bf16 %v1380, %v1380
        %v1382 = vld [vmem:[%s636] sm:$0xf]
        %v1383 = vld [vmem:[%s636 + $0x4] sm:$0xf]
        %v1384 = vld [vmem:[%s636 + $0x8] sm:$0xf]
        %v1385 = vld [vmem:[%s636 + $0xc] sm:$0xf]
        %v1386 = vld [vmem:[%s636 + $0x10] sm:$0xf]
        %v1387 = vld [vmem:[%s636 + $0x14] sm:$0xf]
        %v1388 = vld [vmem:[%s636 + $0x18] sm:$0xf]
        %v1389 = vld [vmem:[%s636 + $0x1c] sm:$0xf]
        %v1390 = vld [vmem:[%s636 + $0x20] sm:$0xf]
        %v1391 = vld [vmem:[%s636 + $0x24] sm:$0xf]
        %v1392 = vld [vmem:[%s636 + $0x28] sm:$0xf]
        %v1393 = vld [vmem:[%s636 + $0x2c] sm:$0xf]
        %v1394 = vld [vmem:[%s636 + $0x30] sm:$0xf]
        %v1395 = vld [vmem:[%s636 + $0x34] sm:$0xf]
        %v1396 = vld [vmem:[%s636 + $0x38] sm:$0xf]
        %v1397 = vld [vmem:[%s636 + $0x3c] sm:$0xf]
        %v1398 = vld [vmem:[%s639] sm:$0x1]
        %v1400 = vlaneseq
        %v1401 = vshrl.u32 %v1400, 7
        %v1402 = vsub.s32 0, %v1401
        %v1403 = vrot.slane %v1398, %v1402
        %v1421 = vunpack.c.l.b16 %v1382
        %v1422 = vunpack.c.l.b16 %v1383
        %v1423 = vunpack.c.l.b16 %v1384
        %v1424 = vunpack.c.l.b16 %v1385
        %v1425 = vunpack.c.l.b16 %v1386
        %v1426 = vunpack.c.l.b16 %v1387
        %v1427 = vunpack.c.l.b16 %v1388
        %v1428 = vunpack.c.l.b16 %v1389
        %v1429 = vunpack.c.l.b16 %v1390
        %v1430 = vunpack.c.l.b16 %v1391
        %v1431 = vunpack.c.l.b16 %v1392
        %v1432 = vunpack.c.l.b16 %v1393
        %v1433 = vunpack.c.l.b16 %v1394
        %v1434 = vunpack.c.l.b16 %v1395
        %v1435 = vunpack.c.l.b16 %v1396
        %v1436 = vunpack.c.l.b16 %v1397
        %v1437 = vpack.c.b16 %v1422, %v1421
        %v1438 = vpack.c.b16 %v1424, %v1423
        %v1439 = vpack.c.b16 %v1426, %v1425
        %v1440 = vpack.c.b16 %v1428, %v1427
        %v1441 = vpack.c.b16 %v1430, %v1429
        %v1442 = vpack.c.b16 %v1432, %v1431
        %v1443 = vpack.c.b16 %v1434, %v1433
        %v1444 = vpack.c.b16 %v1436, %v1435
        %1453 = vmatprep.subr.bf16.mxu0 0
        %1454 = vmatpush1.bf16.msra.mxu0 %v1437
        %1455 = vmatprep.subr.bf16.mxu0 0
        %1456 = vmatpush1.bf16.msra.mxu0 %v1438
        %1457 = vmatprep.subr.bf16.mxu0 0
        %1458 = vmatpush1.bf16.msra.mxu0 %v1439
        %1459 = vmatprep.subr.bf16.mxu0 0
        %1460 = vmatpush1.bf16.msra.mxu0 %v1440
        %1461 = vmatprep.subr.bf16.mxu0 0
        %1462 = vmatpush1.bf16.msra.mxu0 %v1441
        %1463 = vmatprep.subr.bf16.mxu0 0
        %1464 = vmatpush1.bf16.msra.mxu0 %v1442
        %1465 = vmatprep.subr.bf16.mxu0 0
        %1466 = vmatpush1.bf16.msra.mxu0 %v1443
        %1467 = vmatprep.subr.bf16.mxu0 0
        %1468 = vmatpush1.bf16.msra.mxu0 %v1444
        %1469 = vmatprep.subr.bf16.mxu0 0
        %1470 = vmatpush1.bf16.msra.mxu0 0
        %1471 = vmatprep.subr.bf16.mxu0 0
        %1472 = vmatpush1.bf16.msra.mxu0 0
        %1473 = vmatprep.subr.bf16.mxu0 0
        %1474 = vmatpush1.bf16.msra.mxu0 0
        %1475 = vmatprep.subr.bf16.mxu0 0
        %1476 = vmatpush1.bf16.msra.mxu0 0
        %1477 = vmatprep.subr.bf16.mxu0 0
        %1478 = vmatpush1.bf16.msra.mxu0 0
        %1479 = vmatprep.subr.bf16.mxu0 0
        %1480 = vmatpush1.bf16.msra.mxu0 0
        %1481 = vmatprep.subr.bf16.mxu0 0
        %1482 = vmatpush1.bf16.msra.mxu0 0
        %1483 = vmatprep.subr.bf16.mxu0 0
        %1484 = vmatpush1.bf16.msra.mxu0 0
        %1485 = vmatprep.mubr.bf16.mxu0 0
        %1486 = vmatmul.mubr.bf16.gmra.mrb[0].mxu0 %v1381
        %v1487 = vpop.f32.mrb[0].mxu0
        %v1488 = vadd.f32 %v1403, %v1487
        %v1489 = vpop.f32.mrb[0].mxu0
        %v1490 = vpop.f32.mrb[0].mxu0
        %v1491 = vpop.f32.mrb[0].mxu0
        %1492 = vdwg.mxu0
        %v1493 = vadd.f32 %v1276, %v1488
        %1494 = vst.msk [vmem:[%s591] sm:$0xff] %vm651, %v1493
        %s1495 = sand.u32 %s385, 1
        %s1496 = scalar_lea.sflag [#allocation3], %s1495
        %s1497 = sand.u32 %s385, 1
        %s1498 = smul.addr %s1497, 8
        %s1499 = scalar_lea.vmem [#allocation2], %s1498
        // Predicated region
        $region77: #{tpu_custom_call.1} parent=71 // pred_check
          %p1500 = pneg %p395
        $region78: #{tpu_custom_call.1} parent=71 // pred_check_branch
          %1502 = sbr.rel (%p1500) target = $region80
        $region79: #{tpu_custom_call.1} parent=71 // pred_region
          %s1504 = ssub.s32 128, 128
          %1505 = vsyncadd %s1496, %s1504
          %s1506 = smul.addr %s31, 128
          %s1507 = scalar_lea.hbm %s13, %s1506
          %s1509 = sshll.u32 %s1499, 4
          %s1510 = int_to_ptr.vmem [resolvable:$true] %s1509
          %1512 = dma.vmem_to_hbm [thread:$0]  %s1510, 128, %s1507, %s1496
        $region80: #{tpu_custom_call.1} parent=71 // pred_fallthru
          _
      $region72: #{tpu_custom_call.1} parent=5 // pred_fallthru
        _
      %p1513 = scmp.le.s32.totalorder 2, %s22
      // Predicated region
      $region81: #{tpu_custom_call.1} parent=5 // pred_check
        %p1514 = pneg %p1513
      $region82: #{tpu_custom_call.1} parent=5 // pred_check_branch
        %1516 = sbr.rel (%p1514) target = $region84
      $region83: #{tpu_custom_call.1} parent=5 // pred_region
        %s1517 = ssub.s32 %s22, 2
        // Predicated region
        $region85: #{tpu_custom_call.1} parent=83 // pred_check
          %p1518 = pneg %p401
        $region86: #{tpu_custom_call.1} parent=83 // pred_check_branch
          %1520 = sbr.rel (%p1518) target = $region88
        $region87: #{tpu_custom_call.1} parent=83 // pred_region
          %s1521 = sand.u32 %s386, 1
          %s1522 = scalar_lea.sflag [#allocation3], %s1521
          %s1523 = sand.u32 %s386, 1
          %s1524 = smul.addr %s1523, 8
          %s1525 = scalar_lea.vmem [#allocation2], %s1524
          %1526 = dma.done %s1522, 128
        $region88: #{tpu_custom_call.1} parent=83 // pred_fallthru
          _
      $region84: #{tpu_custom_call.1} parent=5 // pred_fallthru
        _
    $region6: #{tpu_custom_call.1} parent=1 // loop_footer
      %s26 = sadd.s32 1, %s22
    $region7: #{tpu_custom_call.1} parent=1 // loop_footer_branch
      %21 = sbr.rel target = $region3
    $region8: #{tpu_custom_call.1} parent=1 // loop_exit
      _
    %1527 = vsyncpa [#allocation3], 1
    %s1528 = scalar_lea.sflag [#allocation3], 1
    %1529 = vsyncpa %s1528, 1

</llo_original>
